<compile_context>
chip_gen: v6e
topology: v6e:2x2x1
jax: 0.10.0
libtpu: 0.0.40
codegen_flags: <defaults>
</compile_context>

<pallas_src>
import functools

import jax
import jax.numpy as jnp
from jax.experimental import pallas as pl
from jax.experimental.pallas import tpu as pltpu

LANE = 128
SUBLANE = 8


def _round_up(x, m):
    return ((x + m - 1) // m) * m


def gru_kernel(x_ref, wih_ref, bih_ref, whh_ref, bhhn_ref,
               hout_ref, h_ref, gx_ref, *, seq_len, mask_tail):
    """One grid step == one (batch block, time block).

    x_ref    : (1, 1, t_blk*nb_blk, C)  time block, rows ordered (t, n), mm_dtype
    wih_ref  : (C, 3*Hp)   W_ih^T, gates [r|z|n], each lane-padded to Hp, mm_dtype
    bih_ref  : (1, 3*Hp)   [b_ih_r+b_hh_r | b_ih_z+b_hh_z | b_ih_n], f32
    whh_ref  : (Hp, 3*Hp)  W_hh^T, same gate layout (padded rows/cols 0), mm_dtype
    bhhn_ref : (1, Hp)     b_hh of the n gate (must stay inside r*(...)), f32
    hout_ref : (nb_blk, Hp) lane/sublane-dense last hidden state (written on the
                            last time block; its block index only depends on the
                            batch axis, so Pallas writes it back once per bb)
    h_ref    : (nb_blk, Hp) VMEM scratch carrying h across time blocks
    gx_ref   : (t_blk, nb_blk, 3*Hp) VMEM scratch for the hoisted projection
    """
    tb = pl.program_id(1)
    nb_blk, hp = h_ref.shape
    t_blk = gx_ref.shape[0]

    @pl.when(tb == 0)
    def _():
        h_ref[...] = jnp.zeros_like(h_ref)

    wih = wih_ref[...]
    whh = whh_ref[...]
    mm_dtype = whh.dtype

    # ---- Phase 1: hoisted input projection for the whole time block.
    # One (t_blk*nb_blk, C) @ (C, 3*Hp) MXU matmul (bf16 in, f32 acc), r/z
    # biases pre-folded.  Staged in VMEM so the per-step read is a
    # sublane-aligned leading-axis index (whole (8,128) tiles, no masks).
    gx = jnp.dot(x_ref[0, 0], wih,
                 preferred_element_type=jnp.float32) + bih_ref[...]
    gx_ref[...] = gx.reshape(t_blk, nb_blk, 3 * hp)

    # Hoist the (1, Hp) -> (nb_blk, Hp) broadcast out of the time loop
    # (JAX does not CSE broadcast_in_dim).
    bhh_n = jnp.broadcast_to(bhhn_ref[...], (nb_blk, hp))

    # ---- Phase 2: serial recurrence over the block.
    def step(t, h):
        gx_t = gx_ref[t]                                    # (nb_blk, 3*Hp)
        gh = jnp.dot(h.astype(mm_dtype), whh,
                     preferred_element_type=jnp.float32)    # (nb_blk, 3*Hp)
        r = jax.nn.sigmoid(gx_t[:, :hp] + gh[:, :hp])
        z = jax.nn.sigmoid(gx_t[:, hp:2 * hp] + gh[:, hp:2 * hp])
        g = jnp.tanh(gx_t[:, 2 * hp:] + r * (gh[:, 2 * hp:] + bhh_n))
        h_new = (1.0 - z) * g + z * h
        if mask_tail:
            # Zero-padded tail timesteps must not advance the state.
            h_new = jnp.where(tb * t_blk + t < seq_len, h_new, h)
        return h_new

    h = h_ref[...]
    if t_blk <= 8:
        # Short block: full unroll (static indices, best LLO visibility).
        for t in range(t_blk):
            h = step(t, h)
    else:
        # Long block: partial unroll bounds vreg live ranges and code size.
        h = jax.lax.fori_loop(0, t_blk, step, h, unroll=8)
    h_ref[...] = h

    @pl.when(tb == pl.num_programs(1) - 1)
    def _():
        hout_ref[...] = h


def _vmem_ceiling_bytes():
    try:
        cap = getattr(pltpu.get_tpu_info(), "vmem_capacity_bytes", 64 << 20)
    except Exception:
        cap = 64 << 20        # conservative fallback (v7x per-TC VMEM)
    return int(cap * 0.85)


def lstm_forward(x_ncl, params, *, t_blk=None, mm_dtype=jnp.bfloat16):
    """Pallas equivalent of LSTM.forward (1-layer GRU + Linear on last step).

    x_ncl: (N, C_in, L_in) float32  ->  (N, output_size) float32.
    mm_dtype: dtype of the matmul inputs (default bf16; accumulation and all
    gate math stay f32).  Pass jnp.float32 for bit-tight numerics.
    """
    w_ih, w_hh, b_ih, b_hh, w_lin, b_lin = params
    N, C, L = x_ncl.shape
    H = w_hh.shape[1]          # (3H, H)
    Hp = _round_up(H, LANE)
    f32 = jnp.float32

    # -- Batch blocking: pad to whole sublanes; split into 2 "parallel" blocks
    #    only when the batch is big enough to feed v7x's second TensorCore.
    n_bblk = 2 if N >= 16 else 1
    nb_blk = _round_up(-(-N // n_bblk), SUBLANE)
    Np = n_bblk * nb_blk

    # -- Time blocking: big blocks amortize the ~0.35us/grid-step cost; cap by
    #    the gx VMEM scratch; non-divisible L handled with a masked tail.
    if t_blk is None:
        gx_bytes_per_step = nb_blk * 3 * Hp * 4
        t_blk = max(1, min(L, 128, (8 << 20) // gx_bytes_per_step))
    n_tblk = pl.cdiv(L, t_blk)
    Lp = n_tblk * t_blk
    mask_tail = (Lp != L)

    # (N, C, L) -> time-major (L, N, C), zero-pad batch/time, block as
    # (n_bblk, n_tblk, t_blk*nb_blk, C) with rows ordered (t, n-within-block).
    x_lnc = jnp.transpose(x_ncl, (2, 0, 1)).astype(f32)
    x_pad = jnp.pad(x_lnc, ((0, Lp - L), (0, Np - N), (0, 0)))
    x_blocked = (x_pad.reshape(n_tblk, t_blk, n_bblk, nb_blk, C)
                 .transpose(2, 0, 1, 3, 4)
                 .reshape(n_bblk, n_tblk, t_blk * nb_blk, C)
                 .astype(mm_dtype))

    # Per-gate lane-aligned weight layout: gate g occupies lanes
    # [g*Hp, (g+1)*Hp); padded rows/cols are zero so padded h-lanes stay inert.
    wih3 = jnp.pad(w_ih.astype(f32).reshape(3, H, C),
                   ((0, 0), (0, Hp - H), (0, 0)))                     # (3, Hp, C)
    wih_t = jnp.transpose(wih3, (2, 0, 1)).reshape(C, 3 * Hp).astype(mm_dtype)

    whh3 = jnp.pad(w_hh.astype(f32).reshape(3, H, H),
                   ((0, 0), (0, Hp - H), (0, Hp - H)))                # (3, Hp, Hp)
    whh_t = jnp.transpose(whh3, (2, 0, 1)).reshape(Hp, 3 * Hp).astype(mm_dtype)

    bih3 = jnp.pad(b_ih.astype(f32).reshape(3, H), ((0, 0), (0, Hp - H)))
    bhh3 = jnp.pad(b_hh.astype(f32).reshape(3, H), ((0, 0), (0, Hp - H)))
    # Fold b_hh into the precomputed projection for r and z; b_hh_n must stay
    # inside the r*(...) term of the n gate.
    bih_comb = jnp.concatenate(
        [bih3[0] + bhh3[0], bih3[1] + bhh3[1], bih3[2]]).reshape(1, 3 * Hp)
    bhh_n = bhh3[2].reshape(1, Hp)

    # -- VMEM budget derived from the actual operands (double-buffered inputs /
    #    outputs + scratch), clamped to ~85% of this chip's VMEM.
    msz = jnp.dtype(mm_dtype).itemsize
    in_bytes = (t_blk * nb_blk * C * msz        # x block
                + C * 3 * Hp * msz              # wih
                + 3 * Hp * 4                    # bih
                + Hp * 3 * Hp * msz             # whh
                + Hp * 4)                       # bhh_n
    out_bytes = nb_blk * Hp * 4
    scratch_bytes = t_blk * nb_blk * 3 * Hp * 4 + nb_blk * Hp * 4
    need = 2 * (in_bytes + out_bytes) + scratch_bytes
    vmem_limit = min(max(32 << 20, int(need * 1.5) + (2 << 20)),
                     _vmem_ceiling_bytes())

    # Grid-invariant operands (constant index_map).  At production Hp on v7x,
    # add pipeline_mode=pl.Buffered(1) here to single-buffer them; omitted at
    # these shapes where it is a no-op, to keep lowering risk-free.
    const2d = lambda shape: pl.BlockSpec(shape, lambda bb, tb: (0, 0))

    kernel = functools.partial(gru_kernel, seq_len=L, mask_tail=mask_tail)

    h_last = pl.pallas_call(
        kernel,
        out_shape=jax.ShapeDtypeStruct((Np, Hp), jnp.float32),
        grid_spec=pltpu.PrefetchScalarGridSpec(
            num_scalar_prefetch=0,
            grid=(n_bblk, n_tblk),
            in_specs=[
                pl.BlockSpec((1, 1, t_blk * nb_blk, C),
                             lambda bb, tb: (bb, tb, 0, 0)),          # x block
                const2d((C, 3 * Hp)),
                const2d((1, 3 * Hp)),
                const2d((Hp, 3 * Hp)),
                const2d((1, Hp)),
            ],
            out_specs=pl.BlockSpec((nb_blk, Hp), lambda bb, tb: (bb, 0)),
            scratch_shapes=[
                pltpu.VMEM((nb_blk, Hp), jnp.float32),                # h carry
                pltpu.VMEM((t_blk, nb_blk, 3 * Hp), jnp.float32),     # gx block
            ],
        ),
        compiler_params=pltpu.CompilerParams(
            # Time axis is inherently sequential; batch blocks are independent
            # ("parallel" -> v7x's 2nd TensorCore when n_bblk > 1; no-op on
            # v5e/v6e single-TC chips).
            dimension_semantics=("parallel", "arbitrary"),
            vmem_limit_bytes=vmem_limit,
        ),
    )(x_blocked, wih_t, bih_comb, whh_t, bhh_n)

    # Final Linear moved out of the kernel (per review: wl/bl would otherwise
    # sit in VMEM on every grid step while being used exactly once).
    # TODO(synk): weight-stationary MXU driving (pltpu.matmul_push_rhs) for the
    # per-step h@Whh only after a bundle dump shows the MXU push slot binding.
    h_valid = h_last[:N, :H]
    return h_valid @ w_lin.astype(f32).T + b_lin.astype(f32)


def init_params(key, input_size, hidden_size, output_size):
    """Deterministic init mirroring the PyTorch module's __init__.

    nn.GRU default init: U(-k, k), k = 1/sqrt(hidden_size), plus the module's
    explicit bias[start:end] = 1.0 fill with start = 3H//4, end = 3H//2
    (kept exactly as in the PyTorch code, even though it straddles gates).
    """
    k_gru = 1.0 / jnp.sqrt(hidden_size)
    keys = jax.random.split(key, 6)
    w_ih = jax.random.uniform(keys[0], (3 * hidden_size, input_size),
                              minval=-k_gru, maxval=k_gru, dtype=jnp.float32)
    w_hh = jax.random.uniform(keys[1], (3 * hidden_size, hidden_size),
                              minval=-k_gru, maxval=k_gru, dtype=jnp.float32)
    b_ih = jax.random.uniform(keys[2], (3 * hidden_size,),
                              minval=-k_gru, maxval=k_gru, dtype=jnp.float32)
    b_hh = jax.random.uniform(keys[3], (3 * hidden_size,),
                              minval=-k_gru, maxval=k_gru, dtype=jnp.float32)
    n = 3 * hidden_size
    start, end = n // 4, n // 2
    b_ih = b_ih.at[start:end].set(1.0)
    b_hh = b_hh.at[start:end].set(1.0)

    k_lin = 1.0 / jnp.sqrt(hidden_size)
    w_lin = jax.random.uniform(keys[4], (output_size, hidden_size),
                               minval=-k_lin, maxval=k_lin, dtype=jnp.float32)
    b_lin = jax.random.uniform(keys[5], (output_size,),
                               minval=-k_lin, maxval=k_lin, dtype=jnp.float32)
    return (w_ih, w_hh, b_ih, b_hh, w_lin, b_lin)


def reference_forward(x_ncl, params):
    """Pure-JAX reference matching torch.nn.GRU(num_layers=1) + Linear."""
    w_ih, w_hh, b_ih, b_hh, w_lin, b_lin = params
    H = w_hh.shape[1]
    x_lnc = jnp.transpose(x_ncl, (2, 0, 1)).astype(jnp.float32)
    N = x_lnc.shape[1]
    h0 = jnp.zeros((N, H), jnp.float32)

    def step(h, x_t):
        gx = x_t @ w_ih.T + b_ih
        gh = h @ w_hh.T + b_hh
        r = jax.nn.sigmoid(gx[:, :H] + gh[:, :H])
        z = jax.nn.sigmoid(gx[:, H:2 * H] + gh[:, H:2 * H])
        n = jnp.tanh(gx[:, 2 * H:] + r * gh[:, 2 * H:])
        h_new = (1.0 - z) * n + z * h
        return h_new, None

    h_last, _ = jax.lax.scan(step, h0, x_lnc)
    return h_last @ w_lin.T + b_lin


if __name__ == "__main__":
    # Shapes implied by forward: inputs (N, C_in, L_in)
    N, C_IN, L_IN = 2, 4, 8
    HIDDEN, OUT = 32, 4

    key = jax.random.PRNGKey(0)
    k_x, k_p, k_x2 = jax.random.split(key, 3)
    x = jax.random.normal(k_x, (N, C_IN, L_IN), dtype=jnp.float32)
    params = init_params(k_p, C_IN, HIDDEN, OUT)
    ref = reference_forward(x, params)

    # f32-matmul path: tight check against the f32 reference.
    out_f32 = jax.block_until_ready(lstm_forward(x, params, mm_dtype=jnp.float32))
    assert out_f32.shape == (N, OUT)
    assert jnp.allclose(out_f32, ref, atol=1e-5, rtol=1e-5), (out_f32, ref)

    # Default path (bf16 matmul inputs, f32 accumulation / gate math): the bf16
    # rounding compounds through the recurrence, so use a looser tolerance.
    out = jax.block_until_ready(lstm_forward(x, params))
    assert out.shape == (N, OUT)
    assert jnp.allclose(out, ref, atol=5e-2, rtol=5e-2), (out, ref)

    # Multi-time-block carry + masked tail (L=8, t_blk=3 -> 3 blocks, 1 pad step).
    out_blk = jax.block_until_ready(
        lstm_forward(x, params, t_blk=3, mm_dtype=jnp.float32))
    assert jnp.allclose(out_blk, ref, atol=1e-5, rtol=1e-5), (out_blk, ref)

    # fori_loop path (t_blk > 8) + masked tail on a non-divisible length.
    L2 = 19
    x2 = jax.random.normal(k_x2, (N, C_IN, L2), dtype=jnp.float32)
    ref2 = reference_forward(x2, params)
    out2 = jax.block_until_ready(
        lstm_forward(x2, params, t_blk=16, mm_dtype=jnp.float32))
    assert jnp.allclose(out2, ref2, atol=1e-4, rtol=1e-4), (out2, ref2)

    print("KERNEL_OK")
</pallas_src>

<mosaic_0001>
module attributes {stable_mosaic.version = 11 : i64} {
  func.func @gru_kernel(%arg0: i32, %arg1: i32, %arg2: memref<1x1x64x4xf32, #tpu.memory_space<vmem>>, %arg3: memref<4x384xf32, #tpu.memory_space<vmem>>, %arg4: memref<1x384xf32, #tpu.memory_space<vmem>>, %arg5: memref<128x384xf32, #tpu.memory_space<vmem>>, %arg6: memref<1x128xf32, #tpu.memory_space<vmem>>, %arg7: memref<8x128xf32, #tpu.memory_space<vmem>>, %arg8: memref<8x128xf32, #tpu.memory_space<vmem>>, %arg9: memref<8x8x384xf32, #tpu.memory_space<vmem>>) attributes {dimension_semantics = [#tpu.dimension_semantics<parallel>, #tpu.dimension_semantics<arbitrary>], iteration_bounds = array<i64: 1, 1>, scalar_prefetch = 0 : i64, scratch_operands = 2 : i64, tpu.core_type = #tpu.core_type<tc>, window_params = [{transform_indices = @transform_0, window_bounds = array<i64: 1, 1, 64, 4>}, {pipeline_mode = #tpu.pipeline_mode<synchronous>, transform_indices = @transform_1, window_bounds = array<i64: 4, 384>}, {pipeline_mode = #tpu.pipeline_mode<synchronous>, transform_indices = @transform_2, window_bounds = array<i64: 1, 384>}, {pipeline_mode = #tpu.pipeline_mode<synchronous>, transform_indices = @transform_3, window_bounds = array<i64: 128, 384>}, {pipeline_mode = #tpu.pipeline_mode<synchronous>, transform_indices = @transform_4, window_bounds = array<i64: 1, 128>}, {transform_indices = @transform_5, window_bounds = array<i64: 8, 128>}]} {
    %c0_i32 = arith.constant 0 : i32
    %0 = arith.cmpi eq, %arg1, %c0_i32 : i32
    %1 = arith.extui %0 : i1 to i32
    %c0_i32_0 = arith.constant 0 : i32
    %2 = arith.cmpi ne, %1, %c0_i32_0 : i32
    scf.if %2 {
      %cst_70 = arith.constant 0.000000e+00 : f32
      %261 = vector.broadcast %cst_70 : f32 to vector<8x128xf32>
      %c0_71 = arith.constant 0 : index
      %c0_72 = arith.constant 0 : index
      %262 = vector.load %arg8[%c0_71, %c0_72] : memref<8x128xf32, #tpu.memory_space<vmem>>, vector<8x128xf32>
      tpu.vector_store %arg8[%c0_71, %c0_72], %261 {strides = array<i32>} : memref<8x128xf32, #tpu.memory_space<vmem>>, vector<8x128xf32>,
    } else {
    }
    %c0 = arith.constant 0 : index
    %c0_1 = arith.constant 0 : index
    %3 = vector.load %arg3[%c0, %c0_1] : memref<4x384xf32, #tpu.memory_space<vmem>>, vector<4x384xf32>
    %c0_2 = arith.constant 0 : index
    %c0_3 = arith.constant 0 : index
    %4 = vector.load %arg5[%c0_2, %c0_3] : memref<128x384xf32, #tpu.memory_space<vmem>>, vector<128x384xf32>
    %c0_4 = arith.constant 0 : index
    %c0_5 = arith.constant 0 : index
    %c0_6 = arith.constant 0 : index
    %c0_7 = arith.constant 0 : index
    %5 = vector.load %arg2[%c0_4, %c0_5, %c0_6, %c0_7] : memref<1x1x64x4xf32, #tpu.memory_space<vmem>>, vector<1x1x64x4xf32>
    %6 = vector.shape_cast %5 : vector<1x1x64x4xf32> to vector<64x4xf32>
    %cst = arith.constant dense<0.000000e+00> : vector<64x384xf32>
    %7 = tpu.matmul %6, %3, %cst {dimension_numbers = #tpu.dot_dimension_numbers<[1], [0], [0], [1], [0, 0, 1, 1], [], []>} : vector<64x4xf32>, vector<4x384xf32>, vector<64x384xf32> -> vector<64x384xf32>
    %c0_8 = arith.constant 0 : index
    %c0_9 = arith.constant 0 : index
    %8 = vector.load %arg4[%c0_8, %c0_9] : memref<1x384xf32, #tpu.memory_space<vmem>>, vector<1x384xf32>
    %9 = vector.broadcast %8 : vector<1x384xf32> to vector<64x384xf32>
    %10 = arith.addf %7, %9 : vector<64x384xf32>
    %11 = vector.shape_cast %10 : vector<64x384xf32> to vector<8x8x384xf32>
    %c0_10 = arith.constant 0 : index
    %c0_11 = arith.constant 0 : index
    %c0_12 = arith.constant 0 : index
    %12 = vector.load %arg9[%c0_10, %c0_11, %c0_12] : memref<8x8x384xf32, #tpu.memory_space<vmem>>, vector<8x8x384xf32>
    tpu.vector_store %arg9[%c0_10, %c0_11, %c0_12], %11 {strides = array<i32>} : memref<8x8x384xf32, #tpu.memory_space<vmem>>, vector<8x8x384xf32>,
    %c0_13 = arith.constant 0 : index
    %c0_14 = arith.constant 0 : index
    %13 = vector.load %arg6[%c0_13, %c0_14] : memref<1x128xf32, #tpu.memory_space<vmem>>, vector<1x128xf32>
    %14 = vector.shape_cast %13 : vector<1x128xf32> to vector<1x128xf32>
    %15 = vector.broadcast %14 : vector<1x128xf32> to vector<8x128xf32>
    %c0_15 = arith.constant 0 : index
    %c0_16 = arith.constant 0 : index
    %16 = vector.load %arg8[%c0_15, %c0_16] : memref<8x128xf32, #tpu.memory_space<vmem>>, vector<8x128xf32>
    %c0_17 = arith.constant 0 : index
    %c0_18 = arith.constant 0 : index
    %c0_19 = arith.constant 0 : index
    %17 = vector.load %arg9[%c0_17, %c0_18, %c0_19] : memref<8x8x384xf32, #tpu.memory_space<vmem>>, vector<1x8x384xf32>
    %18 = vector.shape_cast %17 : vector<1x8x384xf32> to vector<8x384xf32>
    %cst_20 = arith.constant dense<0.000000e+00> : vector<8x384xf32>
    %19 = tpu.matmul %16, %4, %cst_20 {dimension_numbers = #tpu.dot_dimension_numbers<[1], [0], [0], [1], [0, 0, 1, 1], [], []>} : vector<8x128xf32>, vector<128x384xf32>, vector<8x384xf32> -> vector<8x384xf32>
    %20 = vector.extract_strided_slice %18 {offsets = [0, 0], sizes = [8, 128], strides = [1, 1]} : vector<8x384xf32> to vector<8x128xf32>
    %21 = vector.extract_strided_slice %19 {offsets = [0, 0], sizes = [8, 128], strides = [1, 1]} : vector<8x384xf32> to vector<8x128xf32>
    %22 = arith.addf %20, %21 : vector<8x128xf32>
    %23 = arith.negf %22 : vector<8x128xf32>
    %24 = math.exp %23 : vector<8x128xf32>
    %cst_21 = arith.constant 1.000000e+00 : f32
    %25 = vector.broadcast %cst_21 : f32 to vector<8x128xf32>
    %26 = arith.addf %25, %24 : vector<8x128xf32>
    %27 = arith.divf %25, %26 : vector<8x128xf32>
    %28 = vector.extract_strided_slice %18 {offsets = [0, 128], sizes = [8, 128], strides = [1, 1]} : vector<8x384xf32> to vector<8x128xf32>
    %29 = vector.extract_strided_slice %19 {offsets = [0, 128], sizes = [8, 128], strides = [1, 1]} : vector<8x384xf32> to vector<8x128xf32>
    %30 = arith.addf %28, %29 : vector<8x128xf32>
    %31 = arith.negf %30 : vector<8x128xf32>
    %32 = math.exp %31 : vector<8x128xf32>
    %cst_22 = arith.constant 1.000000e+00 : f32
    %33 = vector.broadcast %cst_22 : f32 to vector<8x128xf32>
    %34 = arith.addf %33, %32 : vector<8x128xf32>
    %35 = arith.divf %33, %34 : vector<8x128xf32>
    %36 = vector.extract_strided_slice %18 {offsets = [0, 256], sizes = [8, 128], strides = [1, 1]} : vector<8x384xf32> to vector<8x128xf32>
    %37 = vector.extract_strided_slice %19 {offsets = [0, 256], sizes = [8, 128], strides = [1, 1]} : vector<8x384xf32> to vector<8x128xf32>
    %38 = arith.addf %37, %15 : vector<8x128xf32>
    %39 = arith.mulf %27, %38 : vector<8x128xf32>
    %40 = arith.addf %36, %39 : vector<8x128xf32>
    %41 = math.tanh %40 : vector<8x128xf32>
    %cst_23 = arith.constant 1.000000e+00 : f32
    %42 = vector.broadcast %cst_23 : f32 to vector<8x128xf32>
    %43 = arith.subf %42, %35 : vector<8x128xf32>
    %44 = arith.mulf %43, %41 : vector<8x128xf32>
    %45 = arith.mulf %35, %16 : vector<8x128xf32>
    %46 = arith.addf %44, %45 : vector<8x128xf32>
    %c1 = arith.constant 1 : index
    %c0_24 = arith.constant 0 : index
    %c0_25 = arith.constant 0 : index
    %47 = vector.load %arg9[%c1, %c0_24, %c0_25] : memref<8x8x384xf32, #tpu.memory_space<vmem>>, vector<1x8x384xf32>
    %48 = vector.shape_cast %47 : vector<1x8x384xf32> to vector<8x384xf32>
    %cst_26 = arith.constant dense<0.000000e+00> : vector<8x384xf32>
    %49 = tpu.matmul %46, %4, %cst_26 {dimension_numbers = #tpu.dot_dimension_numbers<[1], [0], [0], [1], [0, 0, 1, 1], [], []>} : vector<8x128xf32>, vector<128x384xf32>, vector<8x384xf32> -> vector<8x384xf32>
    %50 = vector.extract_strided_slice %48 {offsets = [0, 0], sizes = [8, 128], strides = [1, 1]} : vector<8x384xf32> to vector<8x128xf32>
    %51 = vector.extract_strided_slice %49 {offsets = [0, 0], sizes = [8, 128], strides = [1, 1]} : vector<8x384xf32> to vector<8x128xf32>
    %52 = arith.addf %50, %51 : vector<8x128xf32>
    %53 = arith.negf %52 : vector<8x128xf32>
    %54 = math.exp %53 : vector<8x128xf32>
    %cst_27 = arith.constant 1.000000e+00 : f32
    %55 = vector.broadcast %cst_27 : f32 to vector<8x128xf32>
    %56 = arith.addf %55, %54 : vector<8x128xf32>
    %57 = arith.divf %55, %56 : vector<8x128xf32>
    %58 = vector.extract_strided_slice %48 {offsets = [0, 128], sizes = [8, 128], strides = [1, 1]} : vector<8x384xf32> to vector<8x128xf32>
    %59 = vector.extract_strided_slice %49 {offsets = [0, 128], sizes = [8, 128], strides = [1, 1]} : vector<8x384xf32> to vector<8x128xf32>
    %60 = arith.addf %58, %59 : vector<8x128xf32>
    %61 = arith.negf %60 : vector<8x128xf32>
    %62 = math.exp %61 : vector<8x128xf32>
    %cst_28 = arith.constant 1.000000e+00 : f32
    %63 = vector.broadcast %cst_28 : f32 to vector<8x128xf32>
    %64 = arith.addf %63, %62 : vector<8x128xf32>
    %65 = arith.divf %63, %64 : vector<8x128xf32>
    %66 = vector.extract_strided_slice %48 {offsets = [0, 256], sizes = [8, 128], strides = [1, 1]} : vector<8x384xf32> to vector<8x128xf32>
    %67 = vector.extract_strided_slice %49 {offsets = [0, 256], sizes = [8, 128], strides = [1, 1]} : vector<8x384xf32> to vector<8x128xf32>
    %68 = arith.addf %67, %15 : vector<8x128xf32>
    %69 = arith.mulf %57, %68 : vector<8x128xf32>
    %70 = arith.addf %66, %69 : vector<8x128xf32>
    %71 = math.tanh %70 : vector<8x128xf32>
    %cst_29 = arith.constant 1.000000e+00 : f32
    %72 = vector.broadcast %cst_29 : f32 to vector<8x128xf32>
    %73 = arith.subf %72, %65 : vector<8x128xf32>
    %74 = arith.mulf %73, %71 : vector<8x128xf32>
    %75 = arith.mulf %65, %46 : vector<8x128xf32>
    %76 = arith.addf %74, %75 : vector<8x128xf32>
    %c2 = arith.constant 2 : index
    %c0_30 = arith.constant 0 : index
    %c0_31 = arith.constant 0 : index
    %77 = vector.load %arg9[%c2, %c0_30, %c0_31] : memref<8x8x384xf32, #tpu.memory_space<vmem>>, vector<1x8x384xf32>
    %78 = vector.shape_cast %77 : vector<1x8x384xf32> to vector<8x384xf32>
    %cst_32 = arith.constant dense<0.000000e+00> : vector<8x384xf32>
    %79 = tpu.matmul %76, %4, %cst_32 {dimension_numbers = #tpu.dot_dimension_numbers<[1], [0], [0], [1], [0, 0, 1, 1], [], []>} : vector<8x128xf32>, vector<128x384xf32>, vector<8x384xf32> -> vector<8x384xf32>
    %80 = vector.extract_strided_slice %78 {offsets = [0, 0], sizes = [8, 128], strides = [1, 1]} : vector<8x384xf32> to vector<8x128xf32>
    %81 = vector.extract_strided_slice %79 {offsets = [0, 0], sizes = [8, 128], strides = [1, 1]} : vector<8x384xf32> to vector<8x128xf32>
    %82 = arith.addf %80, %81 : vector<8x128xf32>
    %83 = arith.negf %82 : vector<8x128xf32>
    %84 = math.exp %83 : vector<8x128xf32>
    %cst_33 = arith.constant 1.000000e+00 : f32
    %85 = vector.broadcast %cst_33 : f32 to vector<8x128xf32>
    %86 = arith.addf %85, %84 : vector<8x128xf32>
    %87 = arith.divf %85, %86 : vector<8x128xf32>
    %88 = vector.extract_strided_slice %78 {offsets = [0, 128], sizes = [8, 128], strides = [1, 1]} : vector<8x384xf32> to vector<8x128xf32>
    %89 = vector.extract_strided_slice %79 {offsets = [0, 128], sizes = [8, 128], strides = [1, 1]} : vector<8x384xf32> to vector<8x128xf32>
    %90 = arith.addf %88, %89 : vector<8x128xf32>
    %91 = arith.negf %90 : vector<8x128xf32>
    %92 = math.exp %91 : vector<8x128xf32>
    %cst_34 = arith.constant 1.000000e+00 : f32
    %93 = vector.broadcast %cst_34 : f32 to vector<8x128xf32>
    %94 = arith.addf %93, %92 : vector<8x128xf32>
    %95 = arith.divf %93, %94 : vector<8x128xf32>
    %96 = vector.extract_strided_slice %78 {offsets = [0, 256], sizes = [8, 128], strides = [1, 1]} : vector<8x384xf32> to vector<8x128xf32>
    %97 = vector.extract_strided_slice %79 {offsets = [0, 256], sizes = [8, 128], strides = [1, 1]} : vector<8x384xf32> to vector<8x128xf32>
    %98 = arith.addf %97, %15 : vector<8x128xf32>
    %99 = arith.mulf %87, %98 : vector<8x128xf32>
    %100 = arith.addf %96, %99 : vector<8x128xf32>
    %101 = math.tanh %100 : vector<8x128xf32>
    %cst_35 = arith.constant 1.000000e+00 : f32
    %102 = vector.broadcast %cst_35 : f32 to vector<8x128xf32>
    %103 = arith.subf %102, %95 : vector<8x128xf32>
    %104 = arith.mulf %103, %101 : vector<8x128xf32>
    %105 = arith.mulf %95, %76 : vector<8x128xf32>
    %106 = arith.addf %104, %105 : vector<8x128xf32>
    %c3 = arith.constant 3 : index
    %c0_36 = arith.constant 0 : index
    %c0_37 = arith.constant 0 : index
    %107 = vector.load %arg9[%c3, %c0_36, %c0_37] : memref<8x8x384xf32, #tpu.memory_space<vmem>>, vector<1x8x384xf32>
    %108 = vector.shape_cast %107 : vector<1x8x384xf32> to vector<8x384xf32>
    %cst_38 = arith.constant dense<0.000000e+00> : vector<8x384xf32>
    %109 = tpu.matmul %106, %4, %cst_38 {dimension_numbers = #tpu.dot_dimension_numbers<[1], [0], [0], [1], [0, 0, 1, 1], [], []>} : vector<8x128xf32>, vector<128x384xf32>, vector<8x384xf32> -> vector<8x384xf32>
    %110 = vector.extract_strided_slice %108 {offsets = [0, 0], sizes = [8, 128], strides = [1, 1]} : vector<8x384xf32> to vector<8x128xf32>
    %111 = vector.extract_strided_slice %109 {offsets = [0, 0], sizes = [8, 128], strides = [1, 1]} : vector<8x384xf32> to vector<8x128xf32>
    %112 = arith.addf %110, %111 : vector<8x128xf32>
    %113 = arith.negf %112 : vector<8x128xf32>
    %114 = math.exp %113 : vector<8x128xf32>
    %cst_39 = arith.constant 1.000000e+00 : f32
    %115 = vector.broadcast %cst_39 : f32 to vector<8x128xf32>
    %116 = arith.addf %115, %114 : vector<8x128xf32>
    %117 = arith.divf %115, %116 : vector<8x128xf32>
    %118 = vector.extract_strided_slice %108 {offsets = [0, 128], sizes = [8, 128], strides = [1, 1]} : vector<8x384xf32> to vector<8x128xf32>
    %119 = vector.extract_strided_slice %109 {offsets = [0, 128], sizes = [8, 128], strides = [1, 1]} : vector<8x384xf32> to vector<8x128xf32>
    %120 = arith.addf %118, %119 : vector<8x128xf32>
    %121 = arith.negf %120 : vector<8x128xf32>
    %122 = math.exp %121 : vector<8x128xf32>
    %cst_40 = arith.constant 1.000000e+00 : f32
    %123 = vector.broadcast %cst_40 : f32 to vector<8x128xf32>
    %124 = arith.addf %123, %122 : vector<8x128xf32>
    %125 = arith.divf %123, %124 : vector<8x128xf32>
    %126 = vector.extract_strided_slice %108 {offsets = [0, 256], sizes = [8, 128], strides = [1, 1]} : vector<8x384xf32> to vector<8x128xf32>
    %127 = vector.extract_strided_slice %109 {offsets = [0, 256], sizes = [8, 128], strides = [1, 1]} : vector<8x384xf32> to vector<8x128xf32>
    %128 = arith.addf %127, %15 : vector<8x128xf32>
    %129 = arith.mulf %117, %128 : vector<8x128xf32>
    %130 = arith.addf %126, %129 : vector<8x128xf32>
    %131 = math.tanh %130 : vector<8x128xf32>
    %cst_41 = arith.constant 1.000000e+00 : f32
    %132 = vector.broadcast %cst_41 : f32 to vector<8x128xf32>
    %133 = arith.subf %132, %125 : vector<8x128xf32>
    %134 = arith.mulf %133, %131 : vector<8x128xf32>
    %135 = arith.mulf %125, %106 : vector<8x128xf32>
    %136 = arith.addf %134, %135 : vector<8x128xf32>
    %c4 = arith.constant 4 : index
    %c0_42 = arith.constant 0 : index
    %c0_43 = arith.constant 0 : index
    %137 = vector.load %arg9[%c4, %c0_42, %c0_43] : memref<8x8x384xf32, #tpu.memory_space<vmem>>, vector<1x8x384xf32>
    %138 = vector.shape_cast %137 : vector<1x8x384xf32> to vector<8x384xf32>
    %cst_44 = arith.constant dense<0.000000e+00> : vector<8x384xf32>
    %139 = tpu.matmul %136, %4, %cst_44 {dimension_numbers = #tpu.dot_dimension_numbers<[1], [0], [0], [1], [0, 0, 1, 1], [], []>} : vector<8x128xf32>, vector<128x384xf32>, vector<8x384xf32> -> vector<8x384xf32>
    %140 = vector.extract_strided_slice %138 {offsets = [0, 0], sizes = [8, 128], strides = [1, 1]} : vector<8x384xf32> to vector<8x128xf32>
    %141 = vector.extract_strided_slice %139 {offsets = [0, 0], sizes = [8, 128], strides = [1, 1]} : vector<8x384xf32> to vector<8x128xf32>
    %142 = arith.addf %140, %141 : vector<8x128xf32>
    %143 = arith.negf %142 : vector<8x128xf32>
    %144 = math.exp %143 : vector<8x128xf32>
    %cst_45 = arith.constant 1.000000e+00 : f32
    %145 = vector.broadcast %cst_45 : f32 to vector<8x128xf32>
    %146 = arith.addf %145, %144 : vector<8x128xf32>
    %147 = arith.divf %145, %146 : vector<8x128xf32>
    %148 = vector.extract_strided_slice %138 {offsets = [0, 128], sizes = [8, 128], strides = [1, 1]} : vector<8x384xf32> to vector<8x128xf32>
    %149 = vector.extract_strided_slice %139 {offsets = [0, 128], sizes = [8, 128], strides = [1, 1]} : vector<8x384xf32> to vector<8x128xf32>
    %150 = arith.addf %148, %149 : vector<8x128xf32>
    %151 = arith.negf %150 : vector<8x128xf32>
    %152 = math.exp %151 : vector<8x128xf32>
    %cst_46 = arith.constant 1.000000e+00 : f32
    %153 = vector.broadcast %cst_46 : f32 to vector<8x128xf32>
    %154 = arith.addf %153, %152 : vector<8x128xf32>
    %155 = arith.divf %153, %154 : vector<8x128xf32>
    %156 = vector.extract_strided_slice %138 {offsets = [0, 256], sizes = [8, 128], strides = [1, 1]} : vector<8x384xf32> to vector<8x128xf32>
    %157 = vector.extract_strided_slice %139 {offsets = [0, 256], sizes = [8, 128], strides = [1, 1]} : vector<8x384xf32> to vector<8x128xf32>
    %158 = arith.addf %157, %15 : vector<8x128xf32>
    %159 = arith.mulf %147, %158 : vector<8x128xf32>
    %160 = arith.addf %156, %159 : vector<8x128xf32>
    %161 = math.tanh %160 : vector<8x128xf32>
    %cst_47 = arith.constant 1.000000e+00 : f32
    %162 = vector.broadcast %cst_47 : f32 to vector<8x128xf32>
    %163 = arith.subf %162, %155 : vector<8x128xf32>
    %164 = arith.mulf %163, %161 : vector<8x128xf32>
    %165 = arith.mulf %155, %136 : vector<8x128xf32>
    %166 = arith.addf %164, %165 : vector<8x128xf32>
    %c5 = arith.constant 5 : index
    %c0_48 = arith.constant 0 : index
    %c0_49 = arith.constant 0 : index
    %167 = vector.load %arg9[%c5, %c0_48, %c0_49] : memref<8x8x384xf32, #tpu.memory_space<vmem>>, vector<1x8x384xf32>
    %168 = vector.shape_cast %167 : vector<1x8x384xf32> to vector<8x384xf32>
    %cst_50 = arith.constant dense<0.000000e+00> : vector<8x384xf32>
    %169 = tpu.matmul %166, %4, %cst_50 {dimension_numbers = #tpu.dot_dimension_numbers<[1], [0], [0], [1], [0, 0, 1, 1], [], []>} : vector<8x128xf32>, vector<128x384xf32>, vector<8x384xf32> -> vector<8x384xf32>
    %170 = vector.extract_strided_slice %168 {offsets = [0, 0], sizes = [8, 128], strides = [1, 1]} : vector<8x384xf32> to vector<8x128xf32>
    %171 = vector.extract_strided_slice %169 {offsets = [0, 0], sizes = [8, 128], strides = [1, 1]} : vector<8x384xf32> to vector<8x128xf32>
    %172 = arith.addf %170, %171 : vector<8x128xf32>
    %173 = arith.negf %172 : vector<8x128xf32>
    %174 = math.exp %173 : vector<8x128xf32>
    %cst_51 = arith.constant 1.000000e+00 : f32
    %175 = vector.broadcast %cst_51 : f32 to vector<8x128xf32>
    %176 = arith.addf %175, %174 : vector<8x128xf32>
    %177 = arith.divf %175, %176 : vector<8x128xf32>
    %178 = vector.extract_strided_slice %168 {offsets = [0, 128], sizes = [8, 128], strides = [1, 1]} : vector<8x384xf32> to vector<8x128xf32>
    %179 = vector.extract_strided_slice %169 {offsets = [0, 128], sizes = [8, 128], strides = [1, 1]} : vector<8x384xf32> to vector<8x128xf32>
    %180 = arith.addf %178, %179 : vector<8x128xf32>
    %181 = arith.negf %180 : vector<8x128xf32>
    %182 = math.exp %181 : vector<8x128xf32>
    %cst_52 = arith.constant 1.000000e+00 : f32
    %183 = vector.broadcast %cst_52 : f32 to vector<8x128xf32>
    %184 = arith.addf %183, %182 : vector<8x128xf32>
    %185 = arith.divf %183, %184 : vector<8x128xf32>
    %186 = vector.extract_strided_slice %168 {offsets = [0, 256], sizes = [8, 128], strides = [1, 1]} : vector<8x384xf32> to vector<8x128xf32>
    %187 = vector.extract_strided_slice %169 {offsets = [0, 256], sizes = [8, 128], strides = [1, 1]} : vector<8x384xf32> to vector<8x128xf32>
    %188 = arith.addf %187, %15 : vector<8x128xf32>
    %189 = arith.mulf %177, %188 : vector<8x128xf32>
    %190 = arith.addf %186, %189 : vector<8x128xf32>
    %191 = math.tanh %190 : vector<8x128xf32>
    %cst_53 = arith.constant 1.000000e+00 : f32
    %192 = vector.broadcast %cst_53 : f32 to vector<8x128xf32>
    %193 = arith.subf %192, %185 : vector<8x128xf32>
    %194 = arith.mulf %193, %191 : vector<8x128xf32>
    %195 = arith.mulf %185, %166 : vector<8x128xf32>
    %196 = arith.addf %194, %195 : vector<8x128xf32>
    %c6 = arith.constant 6 : index
    %c0_54 = arith.constant 0 : index
    %c0_55 = arith.constant 0 : index
    %197 = vector.load %arg9[%c6, %c0_54, %c0_55] : memref<8x8x384xf32, #tpu.memory_space<vmem>>, vector<1x8x384xf32>
    %198 = vector.shape_cast %197 : vector<1x8x384xf32> to vector<8x384xf32>
    %cst_56 = arith.constant dense<0.000000e+00> : vector<8x384xf32>
    %199 = tpu.matmul %196, %4, %cst_56 {dimension_numbers = #tpu.dot_dimension_numbers<[1], [0], [0], [1], [0, 0, 1, 1], [], []>} : vector<8x128xf32>, vector<128x384xf32>, vector<8x384xf32> -> vector<8x384xf32>
    %200 = vector.extract_strided_slice %198 {offsets = [0, 0], sizes = [8, 128], strides = [1, 1]} : vector<8x384xf32> to vector<8x128xf32>
    %201 = vector.extract_strided_slice %199 {offsets = [0, 0], sizes = [8, 128], strides = [1, 1]} : vector<8x384xf32> to vector<8x128xf32>
    %202 = arith.addf %200, %201 : vector<8x128xf32>
    %203 = arith.negf %202 : vector<8x128xf32>
    %204 = math.exp %203 : vector<8x128xf32>
    %cst_57 = arith.constant 1.000000e+00 : f32
    %205 = vector.broadcast %cst_57 : f32 to vector<8x128xf32>
    %206 = arith.addf %205, %204 : vector<8x128xf32>
    %207 = arith.divf %205, %206 : vector<8x128xf32>
    %208 = vector.extract_strided_slice %198 {offsets = [0, 128], sizes = [8, 128], strides = [1, 1]} : vector<8x384xf32> to vector<8x128xf32>
    %209 = vector.extract_strided_slice %199 {offsets = [0, 128], sizes = [8, 128], strides = [1, 1]} : vector<8x384xf32> to vector<8x128xf32>
    %210 = arith.addf %208, %209 : vector<8x128xf32>
    %211 = arith.negf %210 : vector<8x128xf32>
    %212 = math.exp %211 : vector<8x128xf32>
    %cst_58 = arith.constant 1.000000e+00 : f32
    %213 = vector.broadcast %cst_58 : f32 to vector<8x128xf32>
    %214 = arith.addf %213, %212 : vector<8x128xf32>
    %215 = arith.divf %213, %214 : vector<8x128xf32>
    %216 = vector.extract_strided_slice %198 {offsets = [0, 256], sizes = [8, 128], strides = [1, 1]} : vector<8x384xf32> to vector<8x128xf32>
    %217 = vector.extract_strided_slice %199 {offsets = [0, 256], sizes = [8, 128], strides = [1, 1]} : vector<8x384xf32> to vector<8x128xf32>
    %218 = arith.addf %217, %15 : vector<8x128xf32>
    %219 = arith.mulf %207, %218 : vector<8x128xf32>
    %220 = arith.addf %216, %219 : vector<8x128xf32>
    %221 = math.tanh %220 : vector<8x128xf32>
    %cst_59 = arith.constant 1.000000e+00 : f32
    %222 = vector.broadcast %cst_59 : f32 to vector<8x128xf32>
    %223 = arith.subf %222, %215 : vector<8x128xf32>
    %224 = arith.mulf %223, %221 : vector<8x128xf32>
    %225 = arith.mulf %215, %196 : vector<8x128xf32>
    %226 = arith.addf %224, %225 : vector<8x128xf32>
    %c7 = arith.constant 7 : index
    %c0_60 = arith.constant 0 : index
    %c0_61 = arith.constant 0 : index
    %227 = vector.load %arg9[%c7, %c0_60, %c0_61] : memref<8x8x384xf32, #tpu.memory_space<vmem>>, vector<1x8x384xf32>
    %228 = vector.shape_cast %227 : vector<1x8x384xf32> to vector<8x384xf32>
    %cst_62 = arith.constant dense<0.000000e+00> : vector<8x384xf32>
    %229 = tpu.matmul %226, %4, %cst_62 {dimension_numbers = #tpu.dot_dimension_numbers<[1], [0], [0], [1], [0, 0, 1, 1], [], []>} : vector<8x128xf32>, vector<128x384xf32>, vector<8x384xf32> -> vector<8x384xf32>
    %230 = vector.extract_strided_slice %228 {offsets = [0, 0], sizes = [8, 128], strides = [1, 1]} : vector<8x384xf32> to vector<8x128xf32>
    %231 = vector.extract_strided_slice %229 {offsets = [0, 0], sizes = [8, 128], strides = [1, 1]} : vector<8x384xf32> to vector<8x128xf32>
    %232 = arith.addf %230, %231 : vector<8x128xf32>
    %233 = arith.negf %232 : vector<8x128xf32>
    %234 = math.exp %233 : vector<8x128xf32>
    %cst_63 = arith.constant 1.000000e+00 : f32
    %235 = vector.broadcast %cst_63 : f32 to vector<8x128xf32>
    %236 = arith.addf %235, %234 : vector<8x128xf32>
    %237 = arith.divf %235, %236 : vector<8x128xf32>
    %238 = vector.extract_strided_slice %228 {offsets = [0, 128], sizes = [8, 128], strides = [1, 1]} : vector<8x384xf32> to vector<8x128xf32>
    %239 = vector.extract_strided_slice %229 {offsets = [0, 128], sizes = [8, 128], strides = [1, 1]} : vector<8x384xf32> to vector<8x128xf32>
    %240 = arith.addf %238, %239 : vector<8x128xf32>
    %241 = arith.negf %240 : vector<8x128xf32>
    %242 = math.exp %241 : vector<8x128xf32>
    %cst_64 = arith.constant 1.000000e+00 : f32
    %243 = vector.broadcast %cst_64 : f32 to vector<8x128xf32>
    %244 = arith.addf %243, %242 : vector<8x128xf32>
    %245 = arith.divf %243, %244 : vector<8x128xf32>
    %246 = vector.extract_strided_slice %228 {offsets = [0, 256], sizes = [8, 128], strides = [1, 1]} : vector<8x384xf32> to vector<8x128xf32>
    %247 = vector.extract_strided_slice %229 {offsets = [0, 256], sizes = [8, 128], strides = [1, 1]} : vector<8x384xf32> to vector<8x128xf32>
    %248 = arith.addf %247, %15 : vector<8x128xf32>
    %249 = arith.mulf %237, %248 : vector<8x128xf32>
    %250 = arith.addf %246, %249 : vector<8x128xf32>
    %251 = math.tanh %250 : vector<8x128xf32>
    %cst_65 = arith.constant 1.000000e+00 : f32
    %252 = vector.broadcast %cst_65 : f32 to vector<8x128xf32>
    %253 = arith.subf %252, %245 : vector<8x128xf32>
    %254 = arith.mulf %253, %251 : vector<8x128xf32>
    %255 = arith.mulf %245, %226 : vector<8x128xf32>
    %256 = arith.addf %254, %255 : vector<8x128xf32>
    %c0_66 = arith.constant 0 : index
    %c0_67 = arith.constant 0 : index
    %257 = vector.load %arg8[%c0_66, %c0_67] : memref<8x128xf32, #tpu.memory_space<vmem>>, vector<8x128xf32>
    tpu.vector_store %arg8[%c0_66, %c0_67], %256 {strides = array<i32>} : memref<8x128xf32, #tpu.memory_space<vmem>>, vector<8x128xf32>,
    %c0_i32_68 = arith.constant 0 : i32
    %258 = arith.cmpi eq, %arg1, %c0_i32_68 : i32
    %259 = arith.extui %258 : i1 to i32
    %c0_i32_69 = arith.constant 0 : i32
    %260 = arith.cmpi ne, %259, %c0_i32_69 : i32
    scf.if %260 {
      %c0_70 = arith.constant 0 : index
      %c0_71 = arith.constant 0 : index
      %261 = vector.load %arg7[%c0_70, %c0_71] : memref<8x128xf32, #tpu.memory_space<vmem>>, vector<8x128xf32>
      tpu.vector_store %arg7[%c0_70, %c0_71], %256 {strides = array<i32>} : memref<8x128xf32, #tpu.memory_space<vmem>>, vector<8x128xf32>,
    } else {
    }
    return
  }
  func.func @transform_0(%arg0: i32, %arg1: i32) -> (i32, i32, i32, i32) {
    %c0_i32 = arith.constant 0 : i32
    %c0_i32_0 = arith.constant 0 : i32
    %c0_i32_1 = arith.constant 0 : i32
    return %arg0, %arg1, %c0_i32, %c0_i32_0 : i32, i32, i32, i32
  }
  func.func @transform_1(%arg0: i32, %arg1: i32) -> (i32, i32) {
    %c0_i32 = arith.constant 0 : i32
    %c0_i32_0 = arith.constant 0 : i32
    %c0_i32_1 = arith.constant 0 : i32
    return %c0_i32, %c0_i32_0 : i32, i32
  }
  func.func @transform_2(%arg0: i32, %arg1: i32) -> (i32, i32) {
    %c0_i32 = arith.constant 0 : i32
    %c0_i32_0 = arith.constant 0 : i32
    %c0_i32_1 = arith.constant 0 : i32
    return %c0_i32, %c0_i32_0 : i32, i32
  }
  func.func @transform_3(%arg0: i32, %arg1: i32) -> (i32, i32) {
    %c0_i32 = arith.constant 0 : i32
    %c0_i32_0 = arith.constant 0 : i32
    %c0_i32_1 = arith.constant 0 : i32
    return %c0_i32, %c0_i32_0 : i32, i32
  }
  func.func @transform_4(%arg0: i32, %arg1: i32) -> (i32, i32) {
    %c0_i32 = arith.constant 0 : i32
    %c0_i32_0 = arith.constant 0 : i32
    %c0_i32_1 = arith.constant 0 : i32
    return %c0_i32, %c0_i32_0 : i32, i32
  }
  func.func @transform_5(%arg0: i32, %arg1: i32) -> (i32, i32) {
    %c0_i32 = arith.constant 0 : i32
    %c0_i32_0 = arith.constant 0 : i32
    return %arg0, %c0_i32 : i32, i32
  }
}

</mosaic_0001>

<llo_original>
// kernel: tpu_custom_call.1
$region0: #{tpu_custom_call.1}
  #allocation0 [shape = 'u32[]', space=smem, size = 0x4, offset = 0x4, fixed_abs, tag = 'smem constant byte address 0x4 - core index']
  #allocation1 [shape = 'u32[144,128]{1,0:T(1,128)}', space=vmem, size = 0x12000, scoped, tag = 'internal scratch']
  #allocation2 [shape = 'f32[8,128]{1,0:T(8,128)}', space=vmem, size = 0x1000, scoped, tag = 'scratch operand']
  #allocation3 [shape = 'f32[8,8,384]{2,1,0:T(8,128)}', space=vmem, size = 0x18000, scoped, tag = 'scratch operand']
  %s0 = inlined_call_operand.vmem [shape: f32[1,1,64,4], index: 0, kind: input, shape index: {}]
  %s1 = inlined_call_operand.vmem [shape: f32[4,384], index: 1, kind: input, shape index: {}]
  %s2 = inlined_call_operand.vmem [shape: f32[1,384], index: 2, kind: input, shape index: {}]
  %s3 = inlined_call_operand.hbm [shape: f32[128,384], index: 3, kind: input, shape index: {}]
  %s4 = inlined_call_operand.vmem [shape: f32[1,128], index: 4, kind: input, shape index: {}]
  %s5 = inlined_call_operand.hbm [shape: f32[8,128], index: 5, kind: output, shape index: {}]
  %s6 = sld [smem:[#allocation0]]
  $region42: #{tpu_custom_call.1} parent=0
    _
  %s8 = ssub.s32 1, %s6
  %s9 = scalar_select 0, %s8, %s6
  $region1: #{tpu_custom_call.1} parent=0
    #allocation4 [shape = 'u8[196608]{0}', space=vmem, size = 0x30000, scoped, tag = 'input window, operand 3, single buffered']
    #allocation5 [shape = 's32[1]{0}', space=sflag, size = 0x4, scoped, tag = 'scoped memory for tpu_custom_call.1']
    #allocation6 [shape = 's32[1]{0}', space=sflag, size = 0x4, scoped, tag = 'scoped memory for tpu_custom_call.1']
    #allocation7 [shape = 'u8[4096]{0}', space=vmem, size = 0x1000, scoped, tag = 'output window, operand 0, single buffered']
    %10 = vsyncpa [#allocation5], 0
    %11 = vsyncpa [#allocation6], 0
    // Predicated region
    $region2: #{tpu_custom_call.1} parent=1 // pred_check
      _
    $region3: #{tpu_custom_call.1} parent=1 // pred_check_branch
      %13 = sbr.rel (0) target = $region5
    $region4: #{tpu_custom_call.1} parent=1 // pred_region
      _
    $region5: #{tpu_custom_call.1} parent=1 // pred_fallthru
      _
    // Predicated region
    $region6: #{tpu_custom_call.1} parent=1 // pred_check
      _
    $region7: #{tpu_custom_call.1} parent=1 // pred_check_branch
      %15 = sbr.rel (0) target = $region9
    $region8: #{tpu_custom_call.1} parent=1 // pred_region
      _
    $region9: #{tpu_custom_call.1} parent=1 // pred_fallthru
      _
    // Predicated region
    $region10: #{tpu_custom_call.1} parent=1 // pred_check
      _
    $region11: #{tpu_custom_call.1} parent=1 // pred_check_branch
      %17 = sbr.rel (0) target = $region13
    $region12: #{tpu_custom_call.1} parent=1 // pred_region
      _
    $region13: #{tpu_custom_call.1} parent=1 // pred_fallthru
      _
    // Predicated region
    $region14: #{tpu_custom_call.1} parent=1 // pred_check
      _
    $region15: #{tpu_custom_call.1} parent=1 // pred_check_branch
      %19 = sbr.rel (0) target = $region17
    $region16: #{tpu_custom_call.1} parent=1 // pred_region
      %s21 = ssub.s32 6144, 6144
      %22 = vsyncadd [#allocation5], %s21
      %s23 = sshll.u32 [#allocation4], 4
      %s24 = int_to_ptr.vmem [resolvable:$true] %s23
      %29 = dma.hbm_to_vmem [thread:$0]  %s3, 6144, %s24, [#allocation5], 384, 384, 24
    $region17: #{tpu_custom_call.1} parent=1 // pred_fallthru
      _
    // Predicated region
    $region18: #{tpu_custom_call.1} parent=1 // pred_check
      _
    $region19: #{tpu_custom_call.1} parent=1 // pred_check_branch
      %31 = sbr.rel (0) target = $region21
    $region20: #{tpu_custom_call.1} parent=1 // pred_region
      _
    $region21: #{tpu_custom_call.1} parent=1 // pred_fallthru
      _
    // Predicated region
    $region22: #{tpu_custom_call.1} parent=1 // pred_check
      _
    $region23: #{tpu_custom_call.1} parent=1 // pred_check_branch
      %33 = sbr.rel (0) target = $region25
    $region24: #{tpu_custom_call.1} parent=1 // pred_region
      %34 = dma.done [#allocation5], 6144
    $region25: #{tpu_custom_call.1} parent=1 // pred_fallthru
      _
    %p35 = scmp.eq.s32.totalorder 0, 0
    // Predicated region
    $region26: #{tpu_custom_call.1} parent=1 // pred_check
      %p36 = pneg %p35
    $region27: #{tpu_custom_call.1} parent=1 // pred_check_branch
      %38 = sbr.rel (%p36) target = $region29
    $region28: #{tpu_custom_call.1} parent=1 // pred_region
      %39 = vst [vmem:[#allocation2] sm:$0xff] 0.0
    $region29: #{tpu_custom_call.1} parent=1 // pred_fallthru
      _
    %v40 = vld [vmem:[%s1] sm:$0xff]
    %v41 = vld [vmem:[%s1 + $0x8] sm:$0xf]
    %v42 = vld [vmem:[#allocation4] sm:$0xff]
    %v43 = vld [vmem:[#allocation4 + $0x8] sm:$0xff]
    %v44 = vld [vmem:[#allocation4 + $0x10] sm:$0xff]
    %v45 = vld [vmem:[#allocation4 + $0x18] sm:$0xff]
    %v46 = vld [vmem:[#allocation4 + $0x20] sm:$0xff]
    %v47 = vld [vmem:[#allocation4 + $0x28] sm:$0xff]
    %v48 = vld [vmem:[#allocation4 + $0x30] sm:$0xff]
    %v49 = vld [vmem:[#allocation4 + $0x38] sm:$0xff]
    %v50 = vld [vmem:[#allocation4 + $0x40] sm:$0xff]
    %v51 = vld [vmem:[#allocation4 + $0x48] sm:$0xff]
    %v52 = vld [vmem:[#allocation4 + $0x50] sm:$0xff]
    %v53 = vld [vmem:[#allocation4 + $0x58] sm:$0xff]
    %v54 = vld [vmem:[#allocation4 + $0x60] sm:$0xff]
    %v55 = vld [vmem:[#allocation4 + $0x68] sm:$0xff]
    %v56 = vld [vmem:[#allocation4 + $0x70] sm:$0xff]
    %v57 = vld [vmem:[#allocation4 + $0x78] sm:$0xff]
    %v58 = vld [vmem:[#allocation4 + $0x80] sm:$0xff]
    %v59 = vld [vmem:[#allocation4 + $0x88] sm:$0xff]
    %v60 = vld [vmem:[#allocation4 + $0x90] sm:$0xff]
    %v61 = vld [vmem:[#allocation4 + $0x98] sm:$0xff]
    %v62 = vld [vmem:[#allocation4 + $0xa0] sm:$0xff]
    %v63 = vld [vmem:[#allocation4 + $0xa8] sm:$0xff]
    %v64 = vld [vmem:[#allocation4 + $0xb0] sm:$0xff]
    %v65 = vld [vmem:[#allocation4 + $0xb8] sm:$0xff]
    %v66 = vld [vmem:[#allocation4 + $0xc0] sm:$0xff]
    %v67 = vld [vmem:[#allocation4 + $0xc8] sm:$0xff]
    %v68 = vld [vmem:[#allocation4 + $0xd0] sm:$0xff]
    %v69 = vld [vmem:[#allocation4 + $0xd8] sm:$0xff]
    %v70 = vld [vmem:[#allocation4 + $0xe0] sm:$0xff]
    %v71 = vld [vmem:[#allocation4 + $0xe8] sm:$0xff]
    %v72 = vld [vmem:[#allocation4 + $0xf0] sm:$0xff]
    %v73 = vld [vmem:[#allocation4 + $0xf8] sm:$0xff]
    %v74 = vld [vmem:[#allocation4 + $0x100] sm:$0xff]
    %v75 = vld [vmem:[#allocation4 + $0x108] sm:$0xff]
    %v76 = vld [vmem:[#allocation4 + $0x110] sm:$0xff]
    %v77 = vld [vmem:[#allocation4 + $0x118] sm:$0xff]
    %v78 = vld [vmem:[#allocation4 + $0x120] sm:$0xff]
    %v79 = vld [vmem:[#allocation4 + $0x128] sm:$0xff]
    %v80 = vld [vmem:[#allocation4 + $0x130] sm:$0xff]
    %v81 = vld [vmem:[#allocation4 + $0x138] sm:$0xff]
    %v82 = vld [vmem:[#allocation4 + $0x140] sm:$0xff]
    %v83 = vld [vmem:[#allocation4 + $0x148] sm:$0xff]
    %v84 = vld [vmem:[#allocation4 + $0x150] sm:$0xff]
    %v85 = vld [vmem:[#allocation4 + $0x158] sm:$0xff]
    %v86 = vld [vmem:[#allocation4 + $0x160] sm:$0xff]
    %v87 = vld [vmem:[#allocation4 + $0x168] sm:$0xff]
    %v88 = vld [vmem:[#allocation4 + $0x170] sm:$0xff]
    %v89 = vld [vmem:[#allocation4 + $0x178] sm:$0xff]
    %v90 = vld [vmem:[%s0] sm:$0xff]
    %v91 = vld [vmem:[%s0 + $0x8] sm:$0xff]
    %v92 = vld [vmem:[%s0 + $0x10] sm:$0xff]
    %v93 = vld [vmem:[%s0 + $0x18] sm:$0xff]
    %v94 = vld [vmem:[%s0 + $0x20] sm:$0xff]
    %v95 = vld [vmem:[%s0 + $0x28] sm:$0xff]
    %v96 = vld [vmem:[%s0 + $0x30] sm:$0xff]
    %v97 = vld [vmem:[%s0 + $0x38] sm:$0xff]
    %v98 = vld [vmem:[%s2] sm:$0x7]
    %v100 = vlaneseq
    %v101 = vshrl.u32 %v100, 7
    %v102 = vsub.s32 0, %v101
    %v103 = vrot.slane %v98, %v102
    %v104 = vlaneseq
    %v105 = vshrl.u32 %v104, 7
    %v106 = vsub.s32 1, %v105
    %v107 = vrot.slane %v98, %v106
    %v108 = vlaneseq
    %v109 = vshrl.u32 %v108, 7
    %v110 = vsub.s32 2, %v109
    %v111 = vrot.slane %v98, %v110
    %v117 = vcombine.high %v40, %v40
    %vm118 = vcmask 31744
    %v120 = vsel %vm118, %v90, 0
    %v123 = vsel %vm118, %v91, 0
    %v126 = vsel %vm118, %v92, 0
    %v129 = vsel %vm118, %v93, 0
    %v132 = vsel %vm118, %v94, 0
    %v135 = vsel %vm118, %v95, 0
    %v138 = vsel %vm118, %v96, 0
    %v141 = vsel %vm118, %v97, 0
    %vm143 = vcmask 1043456
    %v144 = vsel %vm143, %v40, 0
    %v146 = vsel %vm143, %v117, 0
    %v148 = vsel %vm143, %v41, 0
    %150 = vmatprep.subr.mxu0 0.0
    %151 = vmatpush1.msra.mxu0 0.0
    %152 = vmatprep.subr.mxu0 0.0
    %153 = vmatpush1.msra.mxu0 0.0
    %154 = vmatprep.subr.mxu0 0.0
    %155 = vmatpush1.msra.mxu0 0.0
    %156 = vmatprep.subr.mxu0 0.0
    %157 = vmatpush1.msra.mxu0 0.0
    %158 = vmatprep.subr.mxu0 0.0
    %159 = vmatpush1.msra.mxu0 0.0
    %160 = vmatprep.subr.mxu0 0.0
    %161 = vmatpush1.msra.mxu0 0.0
    %162 = vmatprep.subr.mxu0 0.0
    %163 = vmatpush1.msra.mxu0 0.0
    %164 = vmatprep.subr.mxu0 0.0
    %165 = vmatpush1.msra.mxu0 0.0
    %166 = vmatprep.subr.mxu0 0.0
    %167 = vmatpush1.msra.mxu0 0.0
    %168 = vmatprep.subr.mxu0 0.0
    %169 = vmatpush1.msra.mxu0 0.0
    %170 = vmatprep.subr.mxu0 0.0
    %171 = vmatpush1.msra.mxu0 0.0
    %172 = vmatprep.subr.mxu0 0.0
    %173 = vmatpush1.msra.mxu0 0.0
    %174 = vmatprep.subr.mxu0 0.0
    %175 = vmatpush1.msra.mxu0 0.0
    %176 = vmatprep.subr.mxu0 0.0
    %177 = vmatpush1.msra.mxu0 0.0
    %178 = vmatprep.subr.mxu0 0.0
    %179 = vmatpush1.msra.mxu0 0.0
    %180 = vmatprep.subr.mxu0 %v146
    %181 = vmatpush1.msra.mxu0 %v144
    %182 = vmatprep.subr.mxu0 0.0
    %183 = vmatpush2.msra.mxu0 0.0
    %184 = vmatprep.subr.mxu0 0.0
    %185 = vmatpush2.msra.mxu0 0.0
    %186 = vmatprep.subr.mxu0 0.0
    %187 = vmatpush2.msra.mxu0 0.0
    %188 = vmatprep.subr.mxu0 0.0
    %189 = vmatpush2.msra.mxu0 0.0
    %190 = vmatprep.subr.mxu0 0.0
    %191 = vmatpush2.msra.mxu0 0.0
    %192 = vmatprep.subr.mxu0 0.0
    %193 = vmatpush2.msra.mxu0 0.0
    %194 = vmatprep.subr.mxu0 0.0
    %195 = vmatpush2.msra.mxu0 0.0
    %196 = vmatprep.subr.mxu0 0.0
    %197 = vmatpush2.msra.mxu0 0.0
    %198 = vmatprep.subr.mxu0 0.0
    %199 = vmatpush2.msra.mxu0 0.0
    %200 = vmatprep.subr.mxu0 0.0
    %201 = vmatpush2.msra.mxu0 0.0
    %202 = vmatprep.subr.mxu0 0.0
    %203 = vmatpush2.msra.mxu0 0.0
    %204 = vmatprep.subr.mxu0 0.0
    %205 = vmatpush2.msra.mxu0 0.0
    %206 = vmatprep.subr.mxu0 0.0
    %207 = vmatpush2.msra.mxu0 0.0
    %208 = vmatprep.subr.mxu0 0.0
    %209 = vmatpush2.msra.mxu0 0.0
    %210 = vmatprep.subr.mxu0 0.0
    %211 = vmatpush2.msra.mxu0 0.0
    %212 = vmatprep.subr.mxu0 0.0
    %213 = vmatpush2.msra.mxu0 0.0
    %214 = vmatprep.mubr.f32.mxu0 0.0
    %215 = vmatmul.mubr.f32.gmra.mxu0 %v120
    %v216 = vpop.f32.mrf.mxu0
    %v217 = vadd.f32 %v103, %v216
    %v218 = vpop.f32.mrf.mxu0
    %v219 = vadd.f32 %v107, %v218
    %220 = vmatprep.mubr.f32.mxu0 0.0
    %221 = vmatmul.mubr.f32.gmra.mxu0 %v123
    %v222 = vpop.f32.mrf.mxu0
    %v223 = vadd.f32 %v103, %v222
    %v224 = vpop.f32.mrf.mxu0
    %v225 = vadd.f32 %v107, %v224
    %226 = vmatprep.mubr.f32.mxu0 0.0
    %227 = vmatmul.mubr.f32.gmra.mxu0 %v126
    %v228 = vpop.f32.mrf.mxu0
    %v229 = vadd.f32 %v103, %v228
    %v230 = vpop.f32.mrf.mxu0
    %v231 = vadd.f32 %v107, %v230
    %232 = vmatprep.mubr.f32.mxu0 0.0
    %233 = vmatmul.mubr.f32.gmra.mxu0 %v129
    %v234 = vpop.f32.mrf.mxu0
    %v235 = vadd.f32 %v103, %v234
    %v236 = vpop.f32.mrf.mxu0
    %v237 = vadd.f32 %v107, %v236
    %238 = vmatprep.mubr.f32.mxu0 0.0
    %239 = vmatmul.mubr.f32.gmra.mxu0 %v132
    %v240 = vpop.f32.mrf.mxu0
    %v241 = vadd.f32 %v103, %v240
    %v242 = vpop.f32.mrf.mxu0
    %v243 = vadd.f32 %v107, %v242
    %244 = vmatprep.mubr.f32.mxu0 0.0
    %245 = vmatmul.mubr.f32.gmra.mxu0 %v135
    %v246 = vpop.f32.mrf.mxu0
    %v247 = vadd.f32 %v103, %v246
    %v248 = vpop.f32.mrf.mxu0
    %v249 = vadd.f32 %v107, %v248
    %250 = vmatprep.mubr.f32.mxu0 0.0
    %251 = vmatmul.mubr.f32.gmra.mxu0 %v138
    %v252 = vpop.f32.mrf.mxu0
    %v253 = vadd.f32 %v103, %v252
    %v254 = vpop.f32.mrf.mxu0
    %v255 = vadd.f32 %v107, %v254
    %256 = vmatprep.mubr.f32.mxu0 0.0
    %257 = vmatmul.mubr.f32.gmra.mxu0 %v141
    %v258 = vpop.f32.mrf.mxu0
    %v259 = vadd.f32 %v103, %v258
    %v260 = vpop.f32.mrf.mxu0
    %v261 = vadd.f32 %v107, %v260
    %262 = vdwg.mxu0
    %263 = vmatprep.subr.mxu0 0.0
    %264 = vmatpush1.msra.mxu0 0.0
    %265 = vmatprep.subr.mxu0 0.0
    %266 = vmatpush1.msra.mxu0 0.0
    %267 = vmatprep.subr.mxu0 0.0
    %268 = vmatpush1.msra.mxu0 0.0
    %269 = vmatprep.subr.mxu0 0.0
    %270 = vmatpush1.msra.mxu0 0.0
    %271 = vmatprep.subr.mxu0 0.0
    %272 = vmatpush1.msra.mxu0 0.0
    %273 = vmatprep.subr.mxu0 0.0
    %274 = vmatpush1.msra.mxu0 0.0
    %275 = vmatprep.subr.mxu0 0.0
    %276 = vmatpush1.msra.mxu0 0.0
    %277 = vmatprep.subr.mxu0 0.0
    %278 = vmatpush1.msra.mxu0 0.0
    %279 = vmatprep.subr.mxu0 0.0
    %280 = vmatpush1.msra.mxu0 0.0
    %281 = vmatprep.subr.mxu0 0.0
    %282 = vmatpush1.msra.mxu0 0.0
    %283 = vmatprep.subr.mxu0 0.0
    %284 = vmatpush1.msra.mxu0 0.0
    %285 = vmatprep.subr.mxu0 0.0
    %286 = vmatpush1.msra.mxu0 0.0
    %287 = vmatprep.subr.mxu0 0.0
    %288 = vmatpush1.msra.mxu0 0.0
    %289 = vmatprep.subr.mxu0 0.0
    %290 = vmatpush1.msra.mxu0 0.0
    %291 = vmatprep.subr.mxu0 0.0
    %292 = vmatpush1.msra.mxu0 0.0
    %293 = vmatprep.subr.mxu0 0.0
    %294 = vmatpush1.msra.mxu0 %v148
    %295 = vmatprep.subr.mxu0 0.0
    %296 = vmatpush2.msra.mxu0 0.0
    %297 = vmatprep.subr.mxu0 0.0
    %298 = vmatpush2.msra.mxu0 0.0
    %299 = vmatprep.subr.mxu0 0.0
    %300 = vmatpush2.msra.mxu0 0.0
    %301 = vmatprep.subr.mxu0 0.0
    %302 = vmatpush2.msra.mxu0 0.0
    %303 = vmatprep.subr.mxu0 0.0
    %304 = vmatpush2.msra.mxu0 0.0
    %305 = vmatprep.subr.mxu0 0.0
    %306 = vmatpush2.msra.mxu0 0.0
    %307 = vmatprep.subr.mxu0 0.0
    %308 = vmatpush2.msra.mxu0 0.0
    %309 = vmatprep.subr.mxu0 0.0
    %310 = vmatpush2.msra.mxu0 0.0
    %311 = vmatprep.subr.mxu0 0.0
    %312 = vmatpush2.msra.mxu0 0.0
    %313 = vmatprep.subr.mxu0 0.0
    %314 = vmatpush2.msra.mxu0 0.0
    %315 = vmatprep.subr.mxu0 0.0
    %316 = vmatpush2.msra.mxu0 0.0
    %317 = vmatprep.subr.mxu0 0.0
    %318 = vmatpush2.msra.mxu0 0.0
    %319 = vmatprep.subr.mxu0 0.0
    %320 = vmatpush2.msra.mxu0 0.0
    %321 = vmatprep.subr.mxu0 0.0
    %322 = vmatpush2.msra.mxu0 0.0
    %323 = vmatprep.subr.mxu0 0.0
    %324 = vmatpush2.msra.mxu0 0.0
    %325 = vmatprep.subr.mxu0 0.0
    %326 = vmatpush2.msra.mxu0 0.0
    %327 = vmatprep.mubr.f32.mxu0 0.0
    %328 = vmatmul.mubr.f32.gmra.mxu0 %v120
    %v329 = vpop.f32.mrf.mxu0
    %v330 = vadd.f32 %v111, %v329
    %v331 = vpop.f32.mrf.mxu0
    %332 = vmatprep.mubr.f32.mxu0 0.0
    %333 = vmatmul.mubr.f32.gmra.mxu0 %v123
    %v334 = vpop.f32.mrf.mxu0
    %v335 = vadd.f32 %v111, %v334
    %v336 = vpop.f32.mrf.mxu0
    %337 = vmatprep.mubr.f32.mxu0 0.0
    %338 = vmatmul.mubr.f32.gmra.mxu0 %v126
    %v339 = vpop.f32.mrf.mxu0
    %v340 = vadd.f32 %v111, %v339
    %v341 = vpop.f32.mrf.mxu0
    %342 = vmatprep.mubr.f32.mxu0 0.0
    %343 = vmatmul.mubr.f32.gmra.mxu0 %v129
    %v344 = vpop.f32.mrf.mxu0
    %v345 = vadd.f32 %v111, %v344
    %v346 = vpop.f32.mrf.mxu0
    %347 = vmatprep.mubr.f32.mxu0 0.0
    %348 = vmatmul.mubr.f32.gmra.mxu0 %v132
    %v349 = vpop.f32.mrf.mxu0
    %v350 = vadd.f32 %v111, %v349
    %v351 = vpop.f32.mrf.mxu0
    %352 = vmatprep.mubr.f32.mxu0 0.0
    %353 = vmatmul.mubr.f32.gmra.mxu0 %v135
    %v354 = vpop.f32.mrf.mxu0
    %v355 = vadd.f32 %v111, %v354
    %v356 = vpop.f32.mrf.mxu0
    %357 = vmatprep.mubr.f32.mxu0 0.0
    %358 = vmatmul.mubr.f32.gmra.mxu0 %v138
    %v359 = vpop.f32.mrf.mxu0
    %v360 = vadd.f32 %v111, %v359
    %v361 = vpop.f32.mrf.mxu0
    %362 = vmatprep.mubr.f32.mxu0 0.0
    %363 = vmatmul.mubr.f32.gmra.mxu0 %v141
    %v364 = vpop.f32.mrf.mxu0
    %v365 = vadd.f32 %v111, %v364
    %v366 = vpop.f32.mrf.mxu0
    %367 = vdwg.mxu0
    %368 = vst [vmem:[#allocation3] sm:$0xff] %v217
    %369 = vst [vmem:[#allocation3 + $0x8] sm:$0xff] %v219
    %370 = vst [vmem:[#allocation3 + $0x10] sm:$0xff] %v330
    %371 = vst [vmem:[#allocation3 + $0x18] sm:$0xff] %v223
    %372 = vst [vmem:[#allocation3 + $0x20] sm:$0xff] %v225
    %373 = vst [vmem:[#allocation3 + $0x28] sm:$0xff] %v335
    %374 = vst [vmem:[#allocation3 + $0x30] sm:$0xff] %v229
    %375 = vst [vmem:[#allocation3 + $0x38] sm:$0xff] %v231
    %376 = vst [vmem:[#allocation3 + $0x40] sm:$0xff] %v340
    %377 = vst [vmem:[#allocation3 + $0x48] sm:$0xff] %v235
    %378 = vst [vmem:[#allocation3 + $0x50] sm:$0xff] %v237
    %379 = vst [vmem:[#allocation3 + $0x58] sm:$0xff] %v345
    %380 = vst [vmem:[#allocation3 + $0x60] sm:$0xff] %v241
    %381 = vst [vmem:[#allocation3 + $0x68] sm:$0xff] %v243
    %382 = vst [vmem:[#allocation3 + $0x70] sm:$0xff] %v350
    %383 = vst [vmem:[#allocation3 + $0x78] sm:$0xff] %v247
    %384 = vst [vmem:[#allocation3 + $0x80] sm:$0xff] %v249
    %385 = vst [vmem:[#allocation3 + $0x88] sm:$0xff] %v355
    %386 = vst [vmem:[#allocation3 + $0x90] sm:$0xff] %v253
    %387 = vst [vmem:[#allocation3 + $0x98] sm:$0xff] %v255
    %388 = vst [vmem:[#allocation3 + $0xa0] sm:$0xff] %v360
    %389 = vst [vmem:[#allocation3 + $0xa8] sm:$0xff] %v259
    %390 = vst [vmem:[#allocation3 + $0xb0] sm:$0xff] %v261
    %391 = vst [vmem:[#allocation3 + $0xb8] sm:$0xff] %v365
    %v392 = vld [vmem:[%s4] sm:$0x1]
    %v394 = vlaneseq
    %v395 = vshrl.u32 %v394, 7
    %v396 = vsub.s32 0, %v395
    %v397 = vrot.slane %v392, %v396
    %v399 = vld [vmem:[#allocation2] sm:$0xff]
    %v400 = vld [vmem:[#allocation3] sm:$0xff]
    %v401 = vld [vmem:[#allocation3 + $0x8] sm:$0xff]
    %v402 = vld [vmem:[#allocation3 + $0x10] sm:$0xff]
    %403 = vmatprep.subr.mxu0 %v88
    %404 = vmatpush1.msra.mxu0 %v87
    %405 = vmatprep.subr.mxu0 %v85
    %406 = vmatpush1.msra.mxu0 %v84
    %407 = vmatprep.subr.mxu0 %v82
    %408 = vmatpush1.msra.mxu0 %v81
    %409 = vmatprep.subr.mxu0 %v79
    %410 = vmatpush1.msra.mxu0 %v78
    %411 = vmatprep.subr.mxu0 %v76
    %412 = vmatpush1.msra.mxu0 %v75
    %413 = vmatprep.subr.mxu0 %v73
    %414 = vmatpush1.msra.mxu0 %v72
    %415 = vmatprep.subr.mxu0 %v70
    %416 = vmatpush1.msra.mxu0 %v69
    %417 = vmatprep.subr.mxu0 %v67
    %418 = vmatpush1.msra.mxu0 %v66
    %419 = vmatprep.subr.mxu0 %v64
    %420 = vmatpush1.msra.mxu0 %v63
    %421 = vmatprep.subr.mxu0 %v61
    %422 = vmatpush1.msra.mxu0 %v60
    %423 = vmatprep.subr.mxu0 %v58
    %424 = vmatpush1.msra.mxu0 %v57
    %425 = vmatprep.subr.mxu0 %v55
    %426 = vmatpush1.msra.mxu0 %v54
    %427 = vmatprep.subr.mxu0 %v52
    %428 = vmatpush1.msra.mxu0 %v51
    %429 = vmatprep.subr.mxu0 %v49
    %430 = vmatpush1.msra.mxu0 %v48
    %431 = vmatprep.subr.mxu0 %v46
    %432 = vmatpush1.msra.mxu0 %v45
    %433 = vmatprep.subr.mxu0 %v43
    %434 = vmatpush1.msra.mxu0 %v42
    %435 = vmatprep.subr.mxu0 0.0
    %436 = vmatpush2.msra.mxu0 0.0
    %437 = vmatprep.subr.mxu0 0.0
    %438 = vmatpush2.msra.mxu0 0.0
    %439 = vmatprep.subr.mxu0 0.0
    %440 = vmatpush2.msra.mxu0 0.0
    %441 = vmatprep.subr.mxu0 0.0
    %442 = vmatpush2.msra.mxu0 0.0
    %443 = vmatprep.subr.mxu0 0.0
    %444 = vmatpush2.msra.mxu0 0.0
    %445 = vmatprep.subr.mxu0 0.0
    %446 = vmatpush2.msra.mxu0 0.0
    %447 = vmatprep.subr.mxu0 0.0
    %448 = vmatpush2.msra.mxu0 0.0
    %449 = vmatprep.subr.mxu0 0.0
    %450 = vmatpush2.msra.mxu0 0.0
    %451 = vmatprep.subr.mxu0 0.0
    %452 = vmatpush2.msra.mxu0 0.0
    %453 = vmatprep.subr.mxu0 0.0
    %454 = vmatpush2.msra.mxu0 0.0
    %455 = vmatprep.subr.mxu0 0.0
    %456 = vmatpush2.msra.mxu0 0.0
    %457 = vmatprep.subr.mxu0 0.0
    %458 = vmatpush2.msra.mxu0 0.0
    %459 = vmatprep.subr.mxu0 0.0
    %460 = vmatpush2.msra.mxu0 0.0
    %461 = vmatprep.subr.mxu0 0.0
    %462 = vmatpush2.msra.mxu0 0.0
    %463 = vmatprep.subr.mxu0 0.0
    %464 = vmatpush2.msra.mxu0 0.0
    %465 = vmatprep.subr.mxu0 0.0
    %466 = vmatpush2.msra.mxu0 0.0
    %467 = vmatprep.mubr.f32.mxu0 0.0
    %468 = vmatmul.mubr.f32.gmra.mxu0 %v399
    %v469 = vpop.f32.mrf.mxu0
    %v470 = vadd.f32 0.0, %v469
    %v471 = vpop.f32.mrf.mxu0
    %v472 = vadd.f32 0.0, %v471
    %473 = vdwg.mxu0
    %474 = vmatprep.subr.mxu0 0.0
    %475 = vmatpush1.msra.mxu0 %v89
    %476 = vmatprep.subr.mxu0 0.0
    %477 = vmatpush1.msra.mxu0 %v86
    %478 = vmatprep.subr.mxu0 0.0
    %479 = vmatpush1.msra.mxu0 %v83
    %480 = vmatprep.subr.mxu0 0.0
    %481 = vmatpush1.msra.mxu0 %v80
    %482 = vmatprep.subr.mxu0 0.0
    %483 = vmatpush1.msra.mxu0 %v77
    %484 = vmatprep.subr.mxu0 0.0
    %485 = vmatpush1.msra.mxu0 %v74
    %486 = vmatprep.subr.mxu0 0.0
    %487 = vmatpush1.msra.mxu0 %v71
    %488 = vmatprep.subr.mxu0 0.0
    %489 = vmatpush1.msra.mxu0 %v68
    %490 = vmatprep.subr.mxu0 0.0
    %491 = vmatpush1.msra.mxu0 %v65
    %492 = vmatprep.subr.mxu0 0.0
    %493 = vmatpush1.msra.mxu0 %v62
    %494 = vmatprep.subr.mxu0 0.0
    %495 = vmatpush1.msra.mxu0 %v59
    %496 = vmatprep.subr.mxu0 0.0
    %497 = vmatpush1.msra.mxu0 %v56
    %498 = vmatprep.subr.mxu0 0.0
    %499 = vmatpush1.msra.mxu0 %v53
    %500 = vmatprep.subr.mxu0 0.0
    %501 = vmatpush1.msra.mxu0 %v50
    %502 = vmatprep.subr.mxu0 0.0
    %503 = vmatpush1.msra.mxu0 %v47
    %504 = vmatprep.subr.mxu0 0.0
    %505 = vmatpush1.msra.mxu0 %v44
    %506 = vmatprep.subr.mxu0 0.0
    %507 = vmatpush2.msra.mxu0 0.0
    %508 = vmatprep.subr.mxu0 0.0
    %509 = vmatpush2.msra.mxu0 0.0
    %510 = vmatprep.subr.mxu0 0.0
    %511 = vmatpush2.msra.mxu0 0.0
    %512 = vmatprep.subr.mxu0 0.0
    %513 = vmatpush2.msra.mxu0 0.0
    %514 = vmatprep.subr.mxu0 0.0
    %515 = vmatpush2.msra.mxu0 0.0
    %516 = vmatprep.subr.mxu0 0.0
    %517 = vmatpush2.msra.mxu0 0.0
    %518 = vmatprep.subr.mxu0 0.0
    %519 = vmatpush2.msra.mxu0 0.0
    %520 = vmatprep.subr.mxu0 0.0
    %521 = vmatpush2.msra.mxu0 0.0
    %522 = vmatprep.subr.mxu0 0.0
    %523 = vmatpush2.msra.mxu0 0.0
    %524 = vmatprep.subr.mxu0 0.0
    %525 = vmatpush2.msra.mxu0 0.0
    %526 = vmatprep.subr.mxu0 0.0
    %527 = vmatpush2.msra.mxu0 0.0
    %528 = vmatprep.subr.mxu0 0.0
    %529 = vmatpush2.msra.mxu0 0.0
    %530 = vmatprep.subr.mxu0 0.0
    %531 = vmatpush2.msra.mxu0 0.0
    %532 = vmatprep.subr.mxu0 0.0
    %533 = vmatpush2.msra.mxu0 0.0
    %534 = vmatprep.subr.mxu0 0.0
    %535 = vmatpush2.msra.mxu0 0.0
    %536 = vmatprep.subr.mxu0 0.0
    %537 = vmatpush2.msra.mxu0 0.0
    %538 = vmatprep.mubr.f32.mxu0 0.0
    %539 = vmatmul.mubr.f32.gmra.mxu0 %v399
    %v540 = vpop.f32.mrf.mxu0
    %v541 = vadd.f32 0.0, %v540
    %v542 = vpop.f32.mrf.mxu0
    %543 = vdwg.mxu0
    %v544 = vadd.f32 %v400, %v470
    %v545 = vxor.u32 %v544, 2147483648
    %v546 = vmul.f32 %v545, 1.442695
    %v547 = vpow.pop %v546
    %v548 = vadd.f32 %v547, 1.0
    %v549 = vrcp.pop %v548
    %v550 = vmul.f32 1.0, %v549
    %v551 = vadd.f32 %v401, %v472
    %v552 = vxor.u32 %v551, 2147483648
    %v553 = vmul.f32 %v552, 1.442695
    %v554 = vpow.pop %v553
    %v555 = vadd.f32 %v554, 1.0
    %v556 = vrcp.pop %v555
    %v557 = vmul.f32 1.0, %v556
    %v558 = vadd.f32 %v541, %v397
    %v559 = vmul.f32 %v550, %v558
    %v560 = vadd.f32 %v402, %v559
    %v561 = vtanh.pop %v560
    %v562 = vsub.f32 1.0, %v557
    %v563 = vmul.f32 %v562, %v561
    %v564 = vmul.f32 %v557, %v399
    %v565 = vadd.f32 %v563, %v564
    %s566 = scalar_lea.vmem [#allocation3], 24
    %v567 = vld [vmem:[%s566] sm:$0xff]
    %v568 = vld [vmem:[%s566 + $0x8] sm:$0xff]
    %v569 = vld [vmem:[%s566 + $0x10] sm:$0xff]
    %570 = vmatprep.subr.mxu0 %v88
    %571 = vmatpush1.msra.mxu0 %v87
    %572 = vmatprep.subr.mxu0 %v85
    %573 = vmatpush1.msra.mxu0 %v84
    %574 = vmatprep.subr.mxu0 %v82
    %575 = vmatpush1.msra.mxu0 %v81
    %576 = vmatprep.subr.mxu0 %v79
    %577 = vmatpush1.msra.mxu0 %v78
    %578 = vmatprep.subr.mxu0 %v76
    %579 = vmatpush1.msra.mxu0 %v75
    %580 = vmatprep.subr.mxu0 %v73
    %581 = vmatpush1.msra.mxu0 %v72
    %582 = vmatprep.subr.mxu0 %v70
    %583 = vmatpush1.msra.mxu0 %v69
    %584 = vmatprep.subr.mxu0 %v67
    %585 = vmatpush1.msra.mxu0 %v66
    %586 = vmatprep.subr.mxu0 %v64
    %587 = vmatpush1.msra.mxu0 %v63
    %588 = vmatprep.subr.mxu0 %v61
    %589 = vmatpush1.msra.mxu0 %v60
    %590 = vmatprep.subr.mxu0 %v58
    %591 = vmatpush1.msra.mxu0 %v57
    %592 = vmatprep.subr.mxu0 %v55
    %593 = vmatpush1.msra.mxu0 %v54
    %594 = vmatprep.subr.mxu0 %v52
    %595 = vmatpush1.msra.mxu0 %v51
    %596 = vmatprep.subr.mxu0 %v49
    %597 = vmatpush1.msra.mxu0 %v48
    %598 = vmatprep.subr.mxu0 %v46
    %599 = vmatpush1.msra.mxu0 %v45
    %600 = vmatprep.subr.mxu0 %v43
    %601 = vmatpush1.msra.mxu0 %v42
    %602 = vmatprep.subr.mxu0 0.0
    %603 = vmatpush2.msra.mxu0 0.0
    %604 = vmatprep.subr.mxu0 0.0
    %605 = vmatpush2.msra.mxu0 0.0
    %606 = vmatprep.subr.mxu0 0.0
    %607 = vmatpush2.msra.mxu0 0.0
    %608 = vmatprep.subr.mxu0 0.0
    %609 = vmatpush2.msra.mxu0 0.0
    %610 = vmatprep.subr.mxu0 0.0
    %611 = vmatpush2.msra.mxu0 0.0
    %612 = vmatprep.subr.mxu0 0.0
    %613 = vmatpush2.msra.mxu0 0.0
    %614 = vmatprep.subr.mxu0 0.0
    %615 = vmatpush2.msra.mxu0 0.0
    %616 = vmatprep.subr.mxu0 0.0
    %617 = vmatpush2.msra.mxu0 0.0
    %618 = vmatprep.subr.mxu0 0.0
    %619 = vmatpush2.msra.mxu0 0.0
    %620 = vmatprep.subr.mxu0 0.0
    %621 = vmatpush2.msra.mxu0 0.0
    %622 = vmatprep.subr.mxu0 0.0
    %623 = vmatpush2.msra.mxu0 0.0
    %624 = vmatprep.subr.mxu0 0.0
    %625 = vmatpush2.msra.mxu0 0.0
    %626 = vmatprep.subr.mxu0 0.0
    %627 = vmatpush2.msra.mxu0 0.0
    %628 = vmatprep.subr.mxu0 0.0
    %629 = vmatpush2.msra.mxu0 0.0
    %630 = vmatprep.subr.mxu0 0.0
    %631 = vmatpush2.msra.mxu0 0.0
    %632 = vmatprep.subr.mxu0 0.0
    %633 = vmatpush2.msra.mxu0 0.0
    %634 = vmatprep.mubr.f32.mxu0 0.0
    %635 = vmatmul.mubr.f32.gmra.mxu0 %v565
    %v636 = vpop.f32.mrf.mxu0
    %v637 = vadd.f32 0.0, %v636
    %v638 = vpop.f32.mrf.mxu0
    %v639 = vadd.f32 0.0, %v638
    %640 = vdwg.mxu0
    %641 = vmatprep.subr.mxu0 0.0
    %642 = vmatpush1.msra.mxu0 %v89
    %643 = vmatprep.subr.mxu0 0.0
    %644 = vmatpush1.msra.mxu0 %v86
    %645 = vmatprep.subr.mxu0 0.0
    %646 = vmatpush1.msra.mxu0 %v83
    %647 = vmatprep.subr.mxu0 0.0
    %648 = vmatpush1.msra.mxu0 %v80
    %649 = vmatprep.subr.mxu0 0.0
    %650 = vmatpush1.msra.mxu0 %v77
    %651 = vmatprep.subr.mxu0 0.0
    %652 = vmatpush1.msra.mxu0 %v74
    %653 = vmatprep.subr.mxu0 0.0
    %654 = vmatpush1.msra.mxu0 %v71
    %655 = vmatprep.subr.mxu0 0.0
    %656 = vmatpush1.msra.mxu0 %v68
    %657 = vmatprep.subr.mxu0 0.0
    %658 = vmatpush1.msra.mxu0 %v65
    %659 = vmatprep.subr.mxu0 0.0
    %660 = vmatpush1.msra.mxu0 %v62
    %661 = vmatprep.subr.mxu0 0.0
    %662 = vmatpush1.msra.mxu0 %v59
    %663 = vmatprep.subr.mxu0 0.0
    %664 = vmatpush1.msra.mxu0 %v56
    %665 = vmatprep.subr.mxu0 0.0
    %666 = vmatpush1.msra.mxu0 %v53
    %667 = vmatprep.subr.mxu0 0.0
    %668 = vmatpush1.msra.mxu0 %v50
    %669 = vmatprep.subr.mxu0 0.0
    %670 = vmatpush1.msra.mxu0 %v47
    %671 = vmatprep.subr.mxu0 0.0
    %672 = vmatpush1.msra.mxu0 %v44
    %673 = vmatprep.subr.mxu0 0.0
    %674 = vmatpush2.msra.mxu0 0.0
    %675 = vmatprep.subr.mxu0 0.0
    %676 = vmatpush2.msra.mxu0 0.0
    %677 = vmatprep.subr.mxu0 0.0
    %678 = vmatpush2.msra.mxu0 0.0
    %679 = vmatprep.subr.mxu0 0.0
    %680 = vmatpush2.msra.mxu0 0.0
    %681 = vmatprep.subr.mxu0 0.0
    %682 = vmatpush2.msra.mxu0 0.0
    %683 = vmatprep.subr.mxu0 0.0
    %684 = vmatpush2.msra.mxu0 0.0
    %685 = vmatprep.subr.mxu0 0.0
    %686 = vmatpush2.msra.mxu0 0.0
    %687 = vmatprep.subr.mxu0 0.0
    %688 = vmatpush2.msra.mxu0 0.0
    %689 = vmatprep.subr.mxu0 0.0
    %690 = vmatpush2.msra.mxu0 0.0
    %691 = vmatprep.subr.mxu0 0.0
    %692 = vmatpush2.msra.mxu0 0.0
    %693 = vmatprep.subr.mxu0 0.0
    %694 = vmatpush2.msra.mxu0 0.0
    %695 = vmatprep.subr.mxu0 0.0
    %696 = vmatpush2.msra.mxu0 0.0
    %697 = vmatprep.subr.mxu0 0.0
    %698 = vmatpush2.msra.mxu0 0.0
    %699 = vmatprep.subr.mxu0 0.0
    %700 = vmatpush2.msra.mxu0 0.0
    %701 = vmatprep.subr.mxu0 0.0
    %702 = vmatpush2.msra.mxu0 0.0
    %703 = vmatprep.subr.mxu0 0.0
    %704 = vmatpush2.msra.mxu0 0.0
    %705 = vmatprep.mubr.f32.mxu0 0.0
    %706 = vmatmul.mubr.f32.gmra.mxu0 %v565
    %v707 = vpop.f32.mrf.mxu0
    %v708 = vadd.f32 0.0, %v707
    %v709 = vpop.f32.mrf.mxu0
    %710 = vdwg.mxu0
    %v711 = vadd.f32 %v567, %v637
    %v712 = vxor.u32 %v711, 2147483648
    %v713 = vmul.f32 %v712, 1.442695
    %v714 = vpow.pop %v713
    %v715 = vadd.f32 %v714, 1.0
    %v716 = vrcp.pop %v715
    %v717 = vmul.f32 1.0, %v716
    %v718 = vadd.f32 %v568, %v639
    %v719 = vxor.u32 %v718, 2147483648
    %v720 = vmul.f32 %v719, 1.442695
    %v721 = vpow.pop %v720
    %v722 = vadd.f32 %v721, 1.0
    %v723 = vrcp.pop %v722
    %v724 = vmul.f32 1.0, %v723
    %v725 = vadd.f32 %v708, %v397
    %v726 = vmul.f32 %v717, %v725
    %v727 = vadd.f32 %v569, %v726
    %v728 = vtanh.pop %v727
    %v729 = vsub.f32 1.0, %v724
    %v730 = vmul.f32 %v729, %v728
    %v731 = vmul.f32 %v724, %v565
    %v732 = vadd.f32 %v730, %v731
    %s733 = scalar_lea.vmem [#allocation3], 48
    %v734 = vld [vmem:[%s733] sm:$0xff]
    %v735 = vld [vmem:[%s733 + $0x8] sm:$0xff]
    %v736 = vld [vmem:[%s733 + $0x10] sm:$0xff]
    %737 = vmatprep.subr.mxu0 %v88
    %738 = vmatpush1.msra.mxu0 %v87
    %739 = vmatprep.subr.mxu0 %v85
    %740 = vmatpush1.msra.mxu0 %v84
    %741 = vmatprep.subr.mxu0 %v82
    %742 = vmatpush1.msra.mxu0 %v81
    %743 = vmatprep.subr.mxu0 %v79
    %744 = vmatpush1.msra.mxu0 %v78
    %745 = vmatprep.subr.mxu0 %v76
    %746 = vmatpush1.msra.mxu0 %v75
    %747 = vmatprep.subr.mxu0 %v73
    %748 = vmatpush1.msra.mxu0 %v72
    %749 = vmatprep.subr.mxu0 %v70
    %750 = vmatpush1.msra.mxu0 %v69
    %751 = vmatprep.subr.mxu0 %v67
    %752 = vmatpush1.msra.mxu0 %v66
    %753 = vmatprep.subr.mxu0 %v64
    %754 = vmatpush1.msra.mxu0 %v63
    %755 = vmatprep.subr.mxu0 %v61
    %756 = vmatpush1.msra.mxu0 %v60
    %757 = vmatprep.subr.mxu0 %v58
    %758 = vmatpush1.msra.mxu0 %v57
    %759 = vmatprep.subr.mxu0 %v55
    %760 = vmatpush1.msra.mxu0 %v54
    %761 = vmatprep.subr.mxu0 %v52
    %762 = vmatpush1.msra.mxu0 %v51
    %763 = vmatprep.subr.mxu0 %v49
    %764 = vmatpush1.msra.mxu0 %v48
    %765 = vmatprep.subr.mxu0 %v46
    %766 = vmatpush1.msra.mxu0 %v45
    %767 = vmatprep.subr.mxu0 %v43
    %768 = vmatpush1.msra.mxu0 %v42
    %769 = vmatprep.subr.mxu0 0.0
    %770 = vmatpush2.msra.mxu0 0.0
    %771 = vmatprep.subr.mxu0 0.0
    %772 = vmatpush2.msra.mxu0 0.0
    %773 = vmatprep.subr.mxu0 0.0
    %774 = vmatpush2.msra.mxu0 0.0
    %775 = vmatprep.subr.mxu0 0.0
    %776 = vmatpush2.msra.mxu0 0.0
    %777 = vmatprep.subr.mxu0 0.0
    %778 = vmatpush2.msra.mxu0 0.0
    %779 = vmatprep.subr.mxu0 0.0
    %780 = vmatpush2.msra.mxu0 0.0
    %781 = vmatprep.subr.mxu0 0.0
    %782 = vmatpush2.msra.mxu0 0.0
    %783 = vmatprep.subr.mxu0 0.0
    %784 = vmatpush2.msra.mxu0 0.0
    %785 = vmatprep.subr.mxu0 0.0
    %786 = vmatpush2.msra.mxu0 0.0
    %787 = vmatprep.subr.mxu0 0.0
    %788 = vmatpush2.msra.mxu0 0.0
    %789 = vmatprep.subr.mxu0 0.0
    %790 = vmatpush2.msra.mxu0 0.0
    %791 = vmatprep.subr.mxu0 0.0
    %792 = vmatpush2.msra.mxu0 0.0
    %793 = vmatprep.subr.mxu0 0.0
    %794 = vmatpush2.msra.mxu0 0.0
    %795 = vmatprep.subr.mxu0 0.0
    %796 = vmatpush2.msra.mxu0 0.0
    %797 = vmatprep.subr.mxu0 0.0
    %798 = vmatpush2.msra.mxu0 0.0
    %799 = vmatprep.subr.mxu0 0.0
    %800 = vmatpush2.msra.mxu0 0.0
    %801 = vmatprep.mubr.f32.mxu0 0.0
    %802 = vmatmul.mubr.f32.gmra.mxu0 %v732
    %v803 = vpop.f32.mrf.mxu0
    %v804 = vadd.f32 0.0, %v803
    %v805 = vpop.f32.mrf.mxu0
    %v806 = vadd.f32 0.0, %v805
    %807 = vdwg.mxu0
    %808 = vmatprep.subr.mxu0 0.0
    %809 = vmatpush1.msra.mxu0 %v89
    %810 = vmatprep.subr.mxu0 0.0
    %811 = vmatpush1.msra.mxu0 %v86
    %812 = vmatprep.subr.mxu0 0.0
    %813 = vmatpush1.msra.mxu0 %v83
    %814 = vmatprep.subr.mxu0 0.0
    %815 = vmatpush1.msra.mxu0 %v80
    %816 = vmatprep.subr.mxu0 0.0
    %817 = vmatpush1.msra.mxu0 %v77
    %818 = vmatprep.subr.mxu0 0.0
    %819 = vmatpush1.msra.mxu0 %v74
    %820 = vmatprep.subr.mxu0 0.0
    %821 = vmatpush1.msra.mxu0 %v71
    %822 = vmatprep.subr.mxu0 0.0
    %823 = vmatpush1.msra.mxu0 %v68
    %824 = vmatprep.subr.mxu0 0.0
    %825 = vmatpush1.msra.mxu0 %v65
    %826 = vmatprep.subr.mxu0 0.0
    %827 = vmatpush1.msra.mxu0 %v62
    %828 = vmatprep.subr.mxu0 0.0
    %829 = vmatpush1.msra.mxu0 %v59
    %830 = vmatprep.subr.mxu0 0.0
    %831 = vmatpush1.msra.mxu0 %v56
    %832 = vmatprep.subr.mxu0 0.0
    %833 = vmatpush1.msra.mxu0 %v53
    %834 = vmatprep.subr.mxu0 0.0
    %835 = vmatpush1.msra.mxu0 %v50
    %836 = vmatprep.subr.mxu0 0.0
    %837 = vmatpush1.msra.mxu0 %v47
    %838 = vmatprep.subr.mxu0 0.0
    %839 = vmatpush1.msra.mxu0 %v44
    %840 = vmatprep.subr.mxu0 0.0
    %841 = vmatpush2.msra.mxu0 0.0
    %842 = vmatprep.subr.mxu0 0.0
    %843 = vmatpush2.msra.mxu0 0.0
    %844 = vmatprep.subr.mxu0 0.0
    %845 = vmatpush2.msra.mxu0 0.0
    %846 = vmatprep.subr.mxu0 0.0
    %847 = vmatpush2.msra.mxu0 0.0
    %848 = vmatprep.subr.mxu0 0.0
    %849 = vmatpush2.msra.mxu0 0.0
    %850 = vmatprep.subr.mxu0 0.0
    %851 = vmatpush2.msra.mxu0 0.0
    %852 = vmatprep.subr.mxu0 0.0
    %853 = vmatpush2.msra.mxu0 0.0
    %854 = vmatprep.subr.mxu0 0.0
    %855 = vmatpush2.msra.mxu0 0.0
    %856 = vmatprep.subr.mxu0 0.0
    %857 = vmatpush2.msra.mxu0 0.0
    %858 = vmatprep.subr.mxu0 0.0
    %859 = vmatpush2.msra.mxu0 0.0
    %860 = vmatprep.subr.mxu0 0.0
    %861 = vmatpush2.msra.mxu0 0.0
    %862 = vmatprep.subr.mxu0 0.0
    %863 = vmatpush2.msra.mxu0 0.0
    %864 = vmatprep.subr.mxu0 0.0
    %865 = vmatpush2.msra.mxu0 0.0
    %866 = vmatprep.subr.mxu0 0.0
    %867 = vmatpush2.msra.mxu0 0.0
    %868 = vmatprep.subr.mxu0 0.0
    %869 = vmatpush2.msra.mxu0 0.0
    %870 = vmatprep.subr.mxu0 0.0
    %871 = vmatpush2.msra.mxu0 0.0
    %872 = vmatprep.mubr.f32.mxu0 0.0
    %873 = vmatmul.mubr.f32.gmra.mxu0 %v732
    %v874 = vpop.f32.mrf.mxu0
    %v875 = vadd.f32 0.0, %v874
    %v876 = vpop.f32.mrf.mxu0
    %877 = vdwg.mxu0
    %v878 = vadd.f32 %v734, %v804
    %v879 = vxor.u32 %v878, 2147483648
    %v880 = vmul.f32 %v879, 1.442695
    %v881 = vpow.pop %v880
    %v882 = vadd.f32 %v881, 1.0
    %v883 = vrcp.pop %v882
    %v884 = vmul.f32 1.0, %v883
    %v885 = vadd.f32 %v735, %v806
    %v886 = vxor.u32 %v885, 2147483648
    %v887 = vmul.f32 %v886, 1.442695
    %v888 = vpow.pop %v887
    %v889 = vadd.f32 %v888, 1.0
    %v890 = vrcp.pop %v889
    %v891 = vmul.f32 1.0, %v890
    %v892 = vadd.f32 %v875, %v397
    %v893 = vmul.f32 %v884, %v892
    %v894 = vadd.f32 %v736, %v893
    %v895 = vtanh.pop %v894
    %v896 = vsub.f32 1.0, %v891
    %v897 = vmul.f32 %v896, %v895
    %v898 = vmul.f32 %v891, %v732
    %v899 = vadd.f32 %v897, %v898
    %s900 = scalar_lea.vmem [#allocation3], 72
    %v901 = vld [vmem:[%s900] sm:$0xff]
    %v902 = vld [vmem:[%s900 + $0x8] sm:$0xff]
    %v903 = vld [vmem:[%s900 + $0x10] sm:$0xff]
    %904 = vmatprep.subr.mxu0 %v88
    %905 = vmatpush1.msra.mxu0 %v87
    %906 = vmatprep.subr.mxu0 %v85
    %907 = vmatpush1.msra.mxu0 %v84
    %908 = vmatprep.subr.mxu0 %v82
    %909 = vmatpush1.msra.mxu0 %v81
    %910 = vmatprep.subr.mxu0 %v79
    %911 = vmatpush1.msra.mxu0 %v78
    %912 = vmatprep.subr.mxu0 %v76
    %913 = vmatpush1.msra.mxu0 %v75
    %914 = vmatprep.subr.mxu0 %v73
    %915 = vmatpush1.msra.mxu0 %v72
    %916 = vmatprep.subr.mxu0 %v70
    %917 = vmatpush1.msra.mxu0 %v69
    %918 = vmatprep.subr.mxu0 %v67
    %919 = vmatpush1.msra.mxu0 %v66
    %920 = vmatprep.subr.mxu0 %v64
    %921 = vmatpush1.msra.mxu0 %v63
    %922 = vmatprep.subr.mxu0 %v61
    %923 = vmatpush1.msra.mxu0 %v60
    %924 = vmatprep.subr.mxu0 %v58
    %925 = vmatpush1.msra.mxu0 %v57
    %926 = vmatprep.subr.mxu0 %v55
    %927 = vmatpush1.msra.mxu0 %v54
    %928 = vmatprep.subr.mxu0 %v52
    %929 = vmatpush1.msra.mxu0 %v51
    %930 = vmatprep.subr.mxu0 %v49
    %931 = vmatpush1.msra.mxu0 %v48
    %932 = vmatprep.subr.mxu0 %v46
    %933 = vmatpush1.msra.mxu0 %v45
    %934 = vmatprep.subr.mxu0 %v43
    %935 = vmatpush1.msra.mxu0 %v42
    %936 = vmatprep.subr.mxu0 0.0
    %937 = vmatpush2.msra.mxu0 0.0
    %938 = vmatprep.subr.mxu0 0.0
    %939 = vmatpush2.msra.mxu0 0.0
    %940 = vmatprep.subr.mxu0 0.0
    %941 = vmatpush2.msra.mxu0 0.0
    %942 = vmatprep.subr.mxu0 0.0
    %943 = vmatpush2.msra.mxu0 0.0
    %944 = vmatprep.subr.mxu0 0.0
    %945 = vmatpush2.msra.mxu0 0.0
    %946 = vmatprep.subr.mxu0 0.0
    %947 = vmatpush2.msra.mxu0 0.0
    %948 = vmatprep.subr.mxu0 0.0
    %949 = vmatpush2.msra.mxu0 0.0
    %950 = vmatprep.subr.mxu0 0.0
    %951 = vmatpush2.msra.mxu0 0.0
    %952 = vmatprep.subr.mxu0 0.0
    %953 = vmatpush2.msra.mxu0 0.0
    %954 = vmatprep.subr.mxu0 0.0
    %955 = vmatpush2.msra.mxu0 0.0
    %956 = vmatprep.subr.mxu0 0.0
    %957 = vmatpush2.msra.mxu0 0.0
    %958 = vmatprep.subr.mxu0 0.0
    %959 = vmatpush2.msra.mxu0 0.0
    %960 = vmatprep.subr.mxu0 0.0
    %961 = vmatpush2.msra.mxu0 0.0
    %962 = vmatprep.subr.mxu0 0.0
    %963 = vmatpush2.msra.mxu0 0.0
    %964 = vmatprep.subr.mxu0 0.0
    %965 = vmatpush2.msra.mxu0 0.0
    %966 = vmatprep.subr.mxu0 0.0
    %967 = vmatpush2.msra.mxu0 0.0
    %968 = vmatprep.mubr.f32.mxu0 0.0
    %969 = vmatmul.mubr.f32.gmra.mxu0 %v899
    %v970 = vpop.f32.mrf.mxu0
    %v971 = vadd.f32 0.0, %v970
    %v972 = vpop.f32.mrf.mxu0
    %v973 = vadd.f32 0.0, %v972
    %974 = vdwg.mxu0
    %975 = vmatprep.subr.mxu0 0.0
    %976 = vmatpush1.msra.mxu0 %v89
    %977 = vmatprep.subr.mxu0 0.0
    %978 = vmatpush1.msra.mxu0 %v86
    %979 = vmatprep.subr.mxu0 0.0
    %980 = vmatpush1.msra.mxu0 %v83
    %981 = vmatprep.subr.mxu0 0.0
    %982 = vmatpush1.msra.mxu0 %v80
    %983 = vmatprep.subr.mxu0 0.0
    %984 = vmatpush1.msra.mxu0 %v77
    %985 = vmatprep.subr.mxu0 0.0
    %986 = vmatpush1.msra.mxu0 %v74
    %987 = vmatprep.subr.mxu0 0.0
    %988 = vmatpush1.msra.mxu0 %v71
    %989 = vmatprep.subr.mxu0 0.0
    %990 = vmatpush1.msra.mxu0 %v68
    %991 = vmatprep.subr.mxu0 0.0
    %992 = vmatpush1.msra.mxu0 %v65
    %993 = vmatprep.subr.mxu0 0.0
    %994 = vmatpush1.msra.mxu0 %v62
    %995 = vmatprep.subr.mxu0 0.0
    %996 = vmatpush1.msra.mxu0 %v59
    %997 = vmatprep.subr.mxu0 0.0
    %998 = vmatpush1.msra.mxu0 %v56
    %999 = vmatprep.subr.mxu0 0.0
    %1000 = vmatpush1.msra.mxu0 %v53
    %1001 = vmatprep.subr.mxu0 0.0
    %1002 = vmatpush1.msra.mxu0 %v50
    %1003 = vmatprep.subr.mxu0 0.0
    %1004 = vmatpush1.msra.mxu0 %v47
    %1005 = vmatprep.subr.mxu0 0.0
    %1006 = vmatpush1.msra.mxu0 %v44
    %1007 = vmatprep.subr.mxu0 0.0
    %1008 = vmatpush2.msra.mxu0 0.0
    %1009 = vmatprep.subr.mxu0 0.0
    %1010 = vmatpush2.msra.mxu0 0.0
    %1011 = vmatprep.subr.mxu0 0.0
    %1012 = vmatpush2.msra.mxu0 0.0
    %1013 = vmatprep.subr.mxu0 0.0
    %1014 = vmatpush2.msra.mxu0 0.0
    %1015 = vmatprep.subr.mxu0 0.0
    %1016 = vmatpush2.msra.mxu0 0.0
    %1017 = vmatprep.subr.mxu0 0.0
    %1018 = vmatpush2.msra.mxu0 0.0
    %1019 = vmatprep.subr.mxu0 0.0
    %1020 = vmatpush2.msra.mxu0 0.0
    %1021 = vmatprep.subr.mxu0 0.0
    %1022 = vmatpush2.msra.mxu0 0.0
    %1023 = vmatprep.subr.mxu0 0.0
    %1024 = vmatpush2.msra.mxu0 0.0
    %1025 = vmatprep.subr.mxu0 0.0
    %1026 = vmatpush2.msra.mxu0 0.0
    %1027 = vmatprep.subr.mxu0 0.0
    %1028 = vmatpush2.msra.mxu0 0.0
    %1029 = vmatprep.subr.mxu0 0.0
    %1030 = vmatpush2.msra.mxu0 0.0
    %1031 = vmatprep.subr.mxu0 0.0
    %1032 = vmatpush2.msra.mxu0 0.0
    %1033 = vmatprep.subr.mxu0 0.0
    %1034 = vmatpush2.msra.mxu0 0.0
    %1035 = vmatprep.subr.mxu0 0.0
    %1036 = vmatpush2.msra.mxu0 0.0
    %1037 = vmatprep.subr.mxu0 0.0
    %1038 = vmatpush2.msra.mxu0 0.0
    %1039 = vmatprep.mubr.f32.mxu0 0.0
    %1040 = vmatmul.mubr.f32.gmra.mxu0 %v899
    %v1041 = vpop.f32.mrf.mxu0
    %v1042 = vadd.f32 0.0, %v1041
    %v1043 = vpop.f32.mrf.mxu0
    %1044 = vdwg.mxu0
    %v1045 = vadd.f32 %v901, %v971
    %v1046 = vxor.u32 %v1045, 2147483648
    %v1047 = vmul.f32 %v1046, 1.442695
    %v1048 = vpow.pop %v1047
    %v1049 = vadd.f32 %v1048, 1.0
    %v1050 = vrcp.pop %v1049
    %v1051 = vmul.f32 1.0, %v1050
    %v1052 = vadd.f32 %v902, %v973
    %v1053 = vxor.u32 %v1052, 2147483648
    %v1054 = vmul.f32 %v1053, 1.442695
    %v1055 = vpow.pop %v1054
    %v1056 = vadd.f32 %v1055, 1.0
    %v1057 = vrcp.pop %v1056
    %v1058 = vmul.f32 1.0, %v1057
    %v1059 = vadd.f32 %v1042, %v397
    %v1060 = vmul.f32 %v1051, %v1059
    %v1061 = vadd.f32 %v903, %v1060
    %v1062 = vtanh.pop %v1061
    %v1063 = vsub.f32 1.0, %v1058
    %v1064 = vmul.f32 %v1063, %v1062
    %v1065 = vmul.f32 %v1058, %v899
    %v1066 = vadd.f32 %v1064, %v1065
    %s1067 = scalar_lea.vmem [#allocation3], 96
    %v1068 = vld [vmem:[%s1067] sm:$0xff]
    %v1069 = vld [vmem:[%s1067 + $0x8] sm:$0xff]
    %v1070 = vld [vmem:[%s1067 + $0x10] sm:$0xff]
    %1071 = vmatprep.subr.mxu0 %v88
    %1072 = vmatpush1.msra.mxu0 %v87
    %1073 = vmatprep.subr.mxu0 %v85
    %1074 = vmatpush1.msra.mxu0 %v84
    %1075 = vmatprep.subr.mxu0 %v82
    %1076 = vmatpush1.msra.mxu0 %v81
    %1077 = vmatprep.subr.mxu0 %v79
    %1078 = vmatpush1.msra.mxu0 %v78
    %1079 = vmatprep.subr.mxu0 %v76
    %1080 = vmatpush1.msra.mxu0 %v75
    %1081 = vmatprep.subr.mxu0 %v73
    %1082 = vmatpush1.msra.mxu0 %v72
    %1083 = vmatprep.subr.mxu0 %v70
    %1084 = vmatpush1.msra.mxu0 %v69
    %1085 = vmatprep.subr.mxu0 %v67
    %1086 = vmatpush1.msra.mxu0 %v66
    %1087 = vmatprep.subr.mxu0 %v64
    %1088 = vmatpush1.msra.mxu0 %v63
    %1089 = vmatprep.subr.mxu0 %v61
    %1090 = vmatpush1.msra.mxu0 %v60
    %1091 = vmatprep.subr.mxu0 %v58
    %1092 = vmatpush1.msra.mxu0 %v57
    %1093 = vmatprep.subr.mxu0 %v55
    %1094 = vmatpush1.msra.mxu0 %v54
    %1095 = vmatprep.subr.mxu0 %v52
    %1096 = vmatpush1.msra.mxu0 %v51
    %1097 = vmatprep.subr.mxu0 %v49
    %1098 = vmatpush1.msra.mxu0 %v48
    %1099 = vmatprep.subr.mxu0 %v46
    %1100 = vmatpush1.msra.mxu0 %v45
    %1101 = vmatprep.subr.mxu0 %v43
    %1102 = vmatpush1.msra.mxu0 %v42
    %1103 = vmatprep.subr.mxu0 0.0
    %1104 = vmatpush2.msra.mxu0 0.0
    %1105 = vmatprep.subr.mxu0 0.0
    %1106 = vmatpush2.msra.mxu0 0.0
    %1107 = vmatprep.subr.mxu0 0.0
    %1108 = vmatpush2.msra.mxu0 0.0
    %1109 = vmatprep.subr.mxu0 0.0
    %1110 = vmatpush2.msra.mxu0 0.0
    %1111 = vmatprep.subr.mxu0 0.0
    %1112 = vmatpush2.msra.mxu0 0.0
    %1113 = vmatprep.subr.mxu0 0.0
    %1114 = vmatpush2.msra.mxu0 0.0
    %1115 = vmatprep.subr.mxu0 0.0
    %1116 = vmatpush2.msra.mxu0 0.0
    %1117 = vmatprep.subr.mxu0 0.0
    %1118 = vmatpush2.msra.mxu0 0.0
    %1119 = vmatprep.subr.mxu0 0.0
    %1120 = vmatpush2.msra.mxu0 0.0
    %1121 = vmatprep.subr.mxu0 0.0
    %1122 = vmatpush2.msra.mxu0 0.0
    %1123 = vmatprep.subr.mxu0 0.0
    %1124 = vmatpush2.msra.mxu0 0.0
    %1125 = vmatprep.subr.mxu0 0.0
    %1126 = vmatpush2.msra.mxu0 0.0
    %1127 = vmatprep.subr.mxu0 0.0
    %1128 = vmatpush2.msra.mxu0 0.0
    %1129 = vmatprep.subr.mxu0 0.0
    %1130 = vmatpush2.msra.mxu0 0.0
    %1131 = vmatprep.subr.mxu0 0.0
    %1132 = vmatpush2.msra.mxu0 0.0
    %1133 = vmatprep.subr.mxu0 0.0
    %1134 = vmatpush2.msra.mxu0 0.0
    %1135 = vmatprep.mubr.f32.mxu0 0.0
    %1136 = vmatmul.mubr.f32.gmra.mxu0 %v1066
    %v1137 = vpop.f32.mrf.mxu0
    %v1138 = vadd.f32 0.0, %v1137
    %v1139 = vpop.f32.mrf.mxu0
    %v1140 = vadd.f32 0.0, %v1139
    %1141 = vdwg.mxu0
    %1142 = vmatprep.subr.mxu0 0.0
    %1143 = vmatpush1.msra.mxu0 %v89
    %1144 = vmatprep.subr.mxu0 0.0
    %1145 = vmatpush1.msra.mxu0 %v86
    %1146 = vmatprep.subr.mxu0 0.0
    %1147 = vmatpush1.msra.mxu0 %v83
    %1148 = vmatprep.subr.mxu0 0.0
    %1149 = vmatpush1.msra.mxu0 %v80
    %1150 = vmatprep.subr.mxu0 0.0
    %1151 = vmatpush1.msra.mxu0 %v77
    %1152 = vmatprep.subr.mxu0 0.0
    %1153 = vmatpush1.msra.mxu0 %v74
    %1154 = vmatprep.subr.mxu0 0.0
    %1155 = vmatpush1.msra.mxu0 %v71
    %1156 = vmatprep.subr.mxu0 0.0
    %1157 = vmatpush1.msra.mxu0 %v68
    %1158 = vmatprep.subr.mxu0 0.0
    %1159 = vmatpush1.msra.mxu0 %v65
    %1160 = vmatprep.subr.mxu0 0.0
    %1161 = vmatpush1.msra.mxu0 %v62
    %1162 = vmatprep.subr.mxu0 0.0
    %1163 = vmatpush1.msra.mxu0 %v59
    %1164 = vmatprep.subr.mxu0 0.0
    %1165 = vmatpush1.msra.mxu0 %v56
    %1166 = vmatprep.subr.mxu0 0.0
    %1167 = vmatpush1.msra.mxu0 %v53
    %1168 = vmatprep.subr.mxu0 0.0
    %1169 = vmatpush1.msra.mxu0 %v50
    %1170 = vmatprep.subr.mxu0 0.0
    %1171 = vmatpush1.msra.mxu0 %v47
    %1172 = vmatprep.subr.mxu0 0.0
    %1173 = vmatpush1.msra.mxu0 %v44
    %1174 = vmatprep.subr.mxu0 0.0
    %1175 = vmatpush2.msra.mxu0 0.0
    %1176 = vmatprep.subr.mxu0 0.0
    %1177 = vmatpush2.msra.mxu0 0.0
    %1178 = vmatprep.subr.mxu0 0.0
    %1179 = vmatpush2.msra.mxu0 0.0
    %1180 = vmatprep.subr.mxu0 0.0
    %1181 = vmatpush2.msra.mxu0 0.0
    %1182 = vmatprep.subr.mxu0 0.0
    %1183 = vmatpush2.msra.mxu0 0.0
    %1184 = vmatprep.subr.mxu0 0.0
    %1185 = vmatpush2.msra.mxu0 0.0
    %1186 = vmatprep.subr.mxu0 0.0
    %1187 = vmatpush2.msra.mxu0 0.0
    %1188 = vmatprep.subr.mxu0 0.0
    %1189 = vmatpush2.msra.mxu0 0.0
    %1190 = vmatprep.subr.mxu0 0.0
    %1191 = vmatpush2.msra.mxu0 0.0
    %1192 = vmatprep.subr.mxu0 0.0
    %1193 = vmatpush2.msra.mxu0 0.0
    %1194 = vmatprep.subr.mxu0 0.0
    %1195 = vmatpush2.msra.mxu0 0.0
    %1196 = vmatprep.subr.mxu0 0.0
    %1197 = vmatpush2.msra.mxu0 0.0
    %1198 = vmatprep.subr.mxu0 0.0
    %1199 = vmatpush2.msra.mxu0 0.0
    %1200 = vmatprep.subr.mxu0 0.0
    %1201 = vmatpush2.msra.mxu0 0.0
    %1202 = vmatprep.subr.mxu0 0.0
    %1203 = vmatpush2.msra.mxu0 0.0
    %1204 = vmatprep.subr.mxu0 0.0
    %1205 = vmatpush2.msra.mxu0 0.0
    %1206 = vmatprep.mubr.f32.mxu0 0.0
    %1207 = vmatmul.mubr.f32.gmra.mxu0 %v1066
    %v1208 = vpop.f32.mrf.mxu0
    %v1209 = vadd.f32 0.0, %v1208
    %v1210 = vpop.f32.mrf.mxu0
    %1211 = vdwg.mxu0
    %v1212 = vadd.f32 %v1068, %v1138
    %v1213 = vxor.u32 %v1212, 2147483648
    %v1214 = vmul.f32 %v1213, 1.442695
    %v1215 = vpow.pop %v1214
    %v1216 = vadd.f32 %v1215, 1.0
    %v1217 = vrcp.pop %v1216
    %v1218 = vmul.f32 1.0, %v1217
    %v1219 = vadd.f32 %v1069, %v1140
    %v1220 = vxor.u32 %v1219, 2147483648
    %v1221 = vmul.f32 %v1220, 1.442695
    %v1222 = vpow.pop %v1221
    %v1223 = vadd.f32 %v1222, 1.0
    %v1224 = vrcp.pop %v1223
    %v1225 = vmul.f32 1.0, %v1224
    %v1226 = vadd.f32 %v1209, %v397
    %v1227 = vmul.f32 %v1218, %v1226
    %v1228 = vadd.f32 %v1070, %v1227
    %v1229 = vtanh.pop %v1228
    %v1230 = vsub.f32 1.0, %v1225
    %v1231 = vmul.f32 %v1230, %v1229
    %v1232 = vmul.f32 %v1225, %v1066
    %v1233 = vadd.f32 %v1231, %v1232
    %s1234 = scalar_lea.vmem [#allocation3], 120
    %v1235 = vld [vmem:[%s1234] sm:$0xff]
    %v1236 = vld [vmem:[%s1234 + $0x8] sm:$0xff]
    %v1237 = vld [vmem:[%s1234 + $0x10] sm:$0xff]
    %1238 = vmatprep.subr.mxu0 %v88
    %1239 = vmatpush1.msra.mxu0 %v87
    %1240 = vmatprep.subr.mxu0 %v85
    %1241 = vmatpush1.msra.mxu0 %v84
    %1242 = vmatprep.subr.mxu0 %v82
    %1243 = vmatpush1.msra.mxu0 %v81
    %1244 = vmatprep.subr.mxu0 %v79
    %1245 = vmatpush1.msra.mxu0 %v78
    %1246 = vmatprep.subr.mxu0 %v76
    %1247 = vmatpush1.msra.mxu0 %v75
    %1248 = vmatprep.subr.mxu0 %v73
    %1249 = vmatpush1.msra.mxu0 %v72
    %1250 = vmatprep.subr.mxu0 %v70
    %1251 = vmatpush1.msra.mxu0 %v69
    %1252 = vmatprep.subr.mxu0 %v67
    %1253 = vmatpush1.msra.mxu0 %v66
    %1254 = vmatprep.subr.mxu0 %v64
    %1255 = vmatpush1.msra.mxu0 %v63
    %1256 = vmatprep.subr.mxu0 %v61
    %1257 = vmatpush1.msra.mxu0 %v60
    %1258 = vmatprep.subr.mxu0 %v58
    %1259 = vmatpush1.msra.mxu0 %v57
    %1260 = vmatprep.subr.mxu0 %v55
    %1261 = vmatpush1.msra.mxu0 %v54
    %1262 = vmatprep.subr.mxu0 %v52
    %1263 = vmatpush1.msra.mxu0 %v51
    %1264 = vmatprep.subr.mxu0 %v49
    %1265 = vmatpush1.msra.mxu0 %v48
    %1266 = vmatprep.subr.mxu0 %v46
    %1267 = vmatpush1.msra.mxu0 %v45
    %1268 = vmatprep.subr.mxu0 %v43
    %1269 = vmatpush1.msra.mxu0 %v42
    %1270 = vmatprep.subr.mxu0 0.0
    %1271 = vmatpush2.msra.mxu0 0.0
    %1272 = vmatprep.subr.mxu0 0.0
    %1273 = vmatpush2.msra.mxu0 0.0
    %1274 = vmatprep.subr.mxu0 0.0
    %1275 = vmatpush2.msra.mxu0 0.0
    %1276 = vmatprep.subr.mxu0 0.0
    %1277 = vmatpush2.msra.mxu0 0.0
    %1278 = vmatprep.subr.mxu0 0.0
    %1279 = vmatpush2.msra.mxu0 0.0
    %1280 = vmatprep.subr.mxu0 0.0
    %1281 = vmatpush2.msra.mxu0 0.0
    %1282 = vmatprep.subr.mxu0 0.0
    %1283 = vmatpush2.msra.mxu0 0.0
    %1284 = vmatprep.subr.mxu0 0.0
    %1285 = vmatpush2.msra.mxu0 0.0
    %1286 = vmatprep.subr.mxu0 0.0
    %1287 = vmatpush2.msra.mxu0 0.0
    %1288 = vmatprep.subr.mxu0 0.0
    %1289 = vmatpush2.msra.mxu0 0.0
    %1290 = vmatprep.subr.mxu0 0.0
    %1291 = vmatpush2.msra.mxu0 0.0
    %1292 = vmatprep.subr.mxu0 0.0
    %1293 = vmatpush2.msra.mxu0 0.0
    %1294 = vmatprep.subr.mxu0 0.0
    %1295 = vmatpush2.msra.mxu0 0.0
    %1296 = vmatprep.subr.mxu0 0.0
    %1297 = vmatpush2.msra.mxu0 0.0
    %1298 = vmatprep.subr.mxu0 0.0
    %1299 = vmatpush2.msra.mxu0 0.0
    %1300 = vmatprep.subr.mxu0 0.0
    %1301 = vmatpush2.msra.mxu0 0.0
    %1302 = vmatprep.mubr.f32.mxu0 0.0
    %1303 = vmatmul.mubr.f32.gmra.mxu0 %v1233
    %v1304 = vpop.f32.mrf.mxu0
    %v1305 = vadd.f32 0.0, %v1304
    %v1306 = vpop.f32.mrf.mxu0
    %v1307 = vadd.f32 0.0, %v1306
    %1308 = vdwg.mxu0
    %1309 = vmatprep.subr.mxu0 0.0
    %1310 = vmatpush1.msra.mxu0 %v89
    %1311 = vmatprep.subr.mxu0 0.0
    %1312 = vmatpush1.msra.mxu0 %v86
    %1313 = vmatprep.subr.mxu0 0.0
    %1314 = vmatpush1.msra.mxu0 %v83
    %1315 = vmatprep.subr.mxu0 0.0
    %1316 = vmatpush1.msra.mxu0 %v80
    %1317 = vmatprep.subr.mxu0 0.0
    %1318 = vmatpush1.msra.mxu0 %v77
    %1319 = vmatprep.subr.mxu0 0.0
    %1320 = vmatpush1.msra.mxu0 %v74
    %1321 = vmatprep.subr.mxu0 0.0
    %1322 = vmatpush1.msra.mxu0 %v71
    %1323 = vmatprep.subr.mxu0 0.0
    %1324 = vmatpush1.msra.mxu0 %v68
    %1325 = vmatprep.subr.mxu0 0.0
    %1326 = vmatpush1.msra.mxu0 %v65
    %1327 = vmatprep.subr.mxu0 0.0
    %1328 = vmatpush1.msra.mxu0 %v62
    %1329 = vmatprep.subr.mxu0 0.0
    %1330 = vmatpush1.msra.mxu0 %v59
    %1331 = vmatprep.subr.mxu0 0.0
    %1332 = vmatpush1.msra.mxu0 %v56
    %1333 = vmatprep.subr.mxu0 0.0
    %1334 = vmatpush1.msra.mxu0 %v53
    %1335 = vmatprep.subr.mxu0 0.0
    %1336 = vmatpush1.msra.mxu0 %v50
    %1337 = vmatprep.subr.mxu0 0.0
    %1338 = vmatpush1.msra.mxu0 %v47
    %1339 = vmatprep.subr.mxu0 0.0
    %1340 = vmatpush1.msra.mxu0 %v44
    %1341 = vmatprep.subr.mxu0 0.0
    %1342 = vmatpush2.msra.mxu0 0.0
    %1343 = vmatprep.subr.mxu0 0.0
    %1344 = vmatpush2.msra.mxu0 0.0
    %1345 = vmatprep.subr.mxu0 0.0
    %1346 = vmatpush2.msra.mxu0 0.0
    %1347 = vmatprep.subr.mxu0 0.0
    %1348 = vmatpush2.msra.mxu0 0.0
    %1349 = vmatprep.subr.mxu0 0.0
    %1350 = vmatpush2.msra.mxu0 0.0
    %1351 = vmatprep.subr.mxu0 0.0
    %1352 = vmatpush2.msra.mxu0 0.0
    %1353 = vmatprep.subr.mxu0 0.0
    %1354 = vmatpush2.msra.mxu0 0.0
    %1355 = vmatprep.subr.mxu0 0.0
    %1356 = vmatpush2.msra.mxu0 0.0
    %1357 = vmatprep.subr.mxu0 0.0
    %1358 = vmatpush2.msra.mxu0 0.0
    %1359 = vmatprep.subr.mxu0 0.0
    %1360 = vmatpush2.msra.mxu0 0.0
    %1361 = vmatprep.subr.mxu0 0.0
    %1362 = vmatpush2.msra.mxu0 0.0
    %1363 = vmatprep.subr.mxu0 0.0
    %1364 = vmatpush2.msra.mxu0 0.0
    %1365 = vmatprep.subr.mxu0 0.0
    %1366 = vmatpush2.msra.mxu0 0.0
    %1367 = vmatprep.subr.mxu0 0.0
    %1368 = vmatpush2.msra.mxu0 0.0
    %1369 = vmatprep.subr.mxu0 0.0
    %1370 = vmatpush2.msra.mxu0 0.0
    %1371 = vmatprep.subr.mxu0 0.0
    %1372 = vmatpush2.msra.mxu0 0.0
    %1373 = vmatprep.mubr.f32.mxu0 0.0
    %1374 = vmatmul.mubr.f32.gmra.mxu0 %v1233
    %v1375 = vpop.f32.mrf.mxu0
    %v1376 = vadd.f32 0.0, %v1375
    %v1377 = vpop.f32.mrf.mxu0
    %1378 = vdwg.mxu0
    %v1379 = vadd.f32 %v1235, %v1305
    %v1380 = vxor.u32 %v1379, 2147483648
    %v1381 = vmul.f32 %v1380, 1.442695
    %v1382 = vpow.pop %v1381
    %v1383 = vadd.f32 %v1382, 1.0
    %v1384 = vrcp.pop %v1383
    %v1385 = vmul.f32 1.0, %v1384
    %v1386 = vadd.f32 %v1236, %v1307
    %v1387 = vxor.u32 %v1386, 2147483648
    %v1388 = vmul.f32 %v1387, 1.442695
    %v1389 = vpow.pop %v1388
    %v1390 = vadd.f32 %v1389, 1.0
    %v1391 = vrcp.pop %v1390
    %v1392 = vmul.f32 1.0, %v1391
    %v1393 = vadd.f32 %v1376, %v397
    %v1394 = vmul.f32 %v1385, %v1393
    %v1395 = vadd.f32 %v1237, %v1394
    %v1396 = vtanh.pop %v1395
    %v1397 = vsub.f32 1.0, %v1392
    %v1398 = vmul.f32 %v1397, %v1396
    %v1399 = vmul.f32 %v1392, %v1233
    %v1400 = vadd.f32 %v1398, %v1399
    %s1401 = scalar_lea.vmem [#allocation3], 144
    %v1402 = vld [vmem:[%s1401] sm:$0xff]
    %v1403 = vld [vmem:[%s1401 + $0x8] sm:$0xff]
    %v1404 = vld [vmem:[%s1401 + $0x10] sm:$0xff]
    %1405 = vmatprep.subr.mxu0 %v88
    %1406 = vmatpush1.msra.mxu0 %v87
    %1407 = vmatprep.subr.mxu0 %v85
    %1408 = vmatpush1.msra.mxu0 %v84
    %1409 = vmatprep.subr.mxu0 %v82
    %1410 = vmatpush1.msra.mxu0 %v81
    %1411 = vmatprep.subr.mxu0 %v79
    %1412 = vmatpush1.msra.mxu0 %v78
    %1413 = vmatprep.subr.mxu0 %v76
    %1414 = vmatpush1.msra.mxu0 %v75
    %1415 = vmatprep.subr.mxu0 %v73
    %1416 = vmatpush1.msra.mxu0 %v72
    %1417 = vmatprep.subr.mxu0 %v70
    %1418 = vmatpush1.msra.mxu0 %v69
    %1419 = vmatprep.subr.mxu0 %v67
    %1420 = vmatpush1.msra.mxu0 %v66
    %1421 = vmatprep.subr.mxu0 %v64
    %1422 = vmatpush1.msra.mxu0 %v63
    %1423 = vmatprep.subr.mxu0 %v61
    %1424 = vmatpush1.msra.mxu0 %v60
    %1425 = vmatprep.subr.mxu0 %v58
    %1426 = vmatpush1.msra.mxu0 %v57
    %1427 = vmatprep.subr.mxu0 %v55
    %1428 = vmatpush1.msra.mxu0 %v54
    %1429 = vmatprep.subr.mxu0 %v52
    %1430 = vmatpush1.msra.mxu0 %v51
    %1431 = vmatprep.subr.mxu0 %v49
    %1432 = vmatpush1.msra.mxu0 %v48
    %1433 = vmatprep.subr.mxu0 %v46
    %1434 = vmatpush1.msra.mxu0 %v45
    %1435 = vmatprep.subr.mxu0 %v43
    %1436 = vmatpush1.msra.mxu0 %v42
    %1437 = vmatprep.subr.mxu0 0.0
    %1438 = vmatpush2.msra.mxu0 0.0
    %1439 = vmatprep.subr.mxu0 0.0
    %1440 = vmatpush2.msra.mxu0 0.0
    %1441 = vmatprep.subr.mxu0 0.0
    %1442 = vmatpush2.msra.mxu0 0.0
    %1443 = vmatprep.subr.mxu0 0.0
    %1444 = vmatpush2.msra.mxu0 0.0
    %1445 = vmatprep.subr.mxu0 0.0
    %1446 = vmatpush2.msra.mxu0 0.0
    %1447 = vmatprep.subr.mxu0 0.0
    %1448 = vmatpush2.msra.mxu0 0.0
    %1449 = vmatprep.subr.mxu0 0.0
    %1450 = vmatpush2.msra.mxu0 0.0
    %1451 = vmatprep.subr.mxu0 0.0
    %1452 = vmatpush2.msra.mxu0 0.0
    %1453 = vmatprep.subr.mxu0 0.0
    %1454 = vmatpush2.msra.mxu0 0.0
    %1455 = vmatprep.subr.mxu0 0.0
    %1456 = vmatpush2.msra.mxu0 0.0
    %1457 = vmatprep.subr.mxu0 0.0
    %1458 = vmatpush2.msra.mxu0 0.0
    %1459 = vmatprep.subr.mxu0 0.0
    %1460 = vmatpush2.msra.mxu0 0.0
    %1461 = vmatprep.subr.mxu0 0.0
    %1462 = vmatpush2.msra.mxu0 0.0
    %1463 = vmatprep.subr.mxu0 0.0
    %1464 = vmatpush2.msra.mxu0 0.0
    %1465 = vmatprep.subr.mxu0 0.0
    %1466 = vmatpush2.msra.mxu0 0.0
    %1467 = vmatprep.subr.mxu0 0.0
    %1468 = vmatpush2.msra.mxu0 0.0
    %1469 = vmatprep.mubr.f32.mxu0 0.0
    %1470 = vmatmul.mubr.f32.gmra.mxu0 %v1400
    %v1471 = vpop.f32.mrf.mxu0
    %v1472 = vadd.f32 0.0, %v1471
    %v1473 = vpop.f32.mrf.mxu0
    %v1474 = vadd.f32 0.0, %v1473
    %1475 = vdwg.mxu0
    %1476 = vmatprep.subr.mxu0 0.0
    %1477 = vmatpush1.msra.mxu0 %v89
    %1478 = vmatprep.subr.mxu0 0.0
    %1479 = vmatpush1.msra.mxu0 %v86
    %1480 = vmatprep.subr.mxu0 0.0
    %1481 = vmatpush1.msra.mxu0 %v83
    %1482 = vmatprep.subr.mxu0 0.0
    %1483 = vmatpush1.msra.mxu0 %v80
    %1484 = vmatprep.subr.mxu0 0.0
    %1485 = vmatpush1.msra.mxu0 %v77
    %1486 = vmatprep.subr.mxu0 0.0
    %1487 = vmatpush1.msra.mxu0 %v74
    %1488 = vmatprep.subr.mxu0 0.0
    %1489 = vmatpush1.msra.mxu0 %v71
    %1490 = vmatprep.subr.mxu0 0.0
    %1491 = vmatpush1.msra.mxu0 %v68
    %1492 = vmatprep.subr.mxu0 0.0
    %1493 = vmatpush1.msra.mxu0 %v65
    %1494 = vmatprep.subr.mxu0 0.0
    %1495 = vmatpush1.msra.mxu0 %v62
    %1496 = vmatprep.subr.mxu0 0.0
    %1497 = vmatpush1.msra.mxu0 %v59
    %1498 = vmatprep.subr.mxu0 0.0
    %1499 = vmatpush1.msra.mxu0 %v56
    %1500 = vmatprep.subr.mxu0 0.0
    %1501 = vmatpush1.msra.mxu0 %v53
    %1502 = vmatprep.subr.mxu0 0.0
    %1503 = vmatpush1.msra.mxu0 %v50
    %1504 = vmatprep.subr.mxu0 0.0
    %1505 = vmatpush1.msra.mxu0 %v47
    %1506 = vmatprep.subr.mxu0 0.0
    %1507 = vmatpush1.msra.mxu0 %v44
    %1508 = vmatprep.subr.mxu0 0.0
    %1509 = vmatpush2.msra.mxu0 0.0
    %1510 = vmatprep.subr.mxu0 0.0
    %1511 = vmatpush2.msra.mxu0 0.0
    %1512 = vmatprep.subr.mxu0 0.0
    %1513 = vmatpush2.msra.mxu0 0.0
    %1514 = vmatprep.subr.mxu0 0.0
    %1515 = vmatpush2.msra.mxu0 0.0
    %1516 = vmatprep.subr.mxu0 0.0
    %1517 = vmatpush2.msra.mxu0 0.0
    %1518 = vmatprep.subr.mxu0 0.0
    %1519 = vmatpush2.msra.mxu0 0.0
    %1520 = vmatprep.subr.mxu0 0.0
    %1521 = vmatpush2.msra.mxu0 0.0
    %1522 = vmatprep.subr.mxu0 0.0
    %1523 = vmatpush2.msra.mxu0 0.0
    %1524 = vmatprep.subr.mxu0 0.0
    %1525 = vmatpush2.msra.mxu0 0.0
    %1526 = vmatprep.subr.mxu0 0.0
    %1527 = vmatpush2.msra.mxu0 0.0
    %1528 = vmatprep.subr.mxu0 0.0
    %1529 = vmatpush2.msra.mxu0 0.0
    %1530 = vmatprep.subr.mxu0 0.0
    %1531 = vmatpush2.msra.mxu0 0.0
    %1532 = vmatprep.subr.mxu0 0.0
    %1533 = vmatpush2.msra.mxu0 0.0
    %1534 = vmatprep.subr.mxu0 0.0
    %1535 = vmatpush2.msra.mxu0 0.0
    %1536 = vmatprep.subr.mxu0 0.0
    %1537 = vmatpush2.msra.mxu0 0.0
    %1538 = vmatprep.subr.mxu0 0.0
    %1539 = vmatpush2.msra.mxu0 0.0
    %1540 = vmatprep.mubr.f32.mxu0 0.0
    %1541 = vmatmul.mubr.f32.gmra.mxu0 %v1400
    %v1542 = vpop.f32.mrf.mxu0
    %v1543 = vadd.f32 0.0, %v1542
    %v1544 = vpop.f32.mrf.mxu0
    %1545 = vdwg.mxu0
    %v1546 = vadd.f32 %v1402, %v1472
    %v1547 = vxor.u32 %v1546, 2147483648
    %v1548 = vmul.f32 %v1547, 1.442695
    %v1549 = vpow.pop %v1548
    %v1550 = vadd.f32 %v1549, 1.0
    %v1551 = vrcp.pop %v1550
    %v1552 = vmul.f32 1.0, %v1551
    %v1553 = vadd.f32 %v1403, %v1474
    %v1554 = vxor.u32 %v1553, 2147483648
    %v1555 = vmul.f32 %v1554, 1.442695
    %v1556 = vpow.pop %v1555
    %v1557 = vadd.f32 %v1556, 1.0
    %v1558 = vrcp.pop %v1557
    %v1559 = vmul.f32 1.0, %v1558
    %v1560 = vadd.f32 %v1543, %v397
    %v1561 = vmul.f32 %v1552, %v1560
    %v1562 = vadd.f32 %v1404, %v1561
    %v1563 = vtanh.pop %v1562
    %v1564 = vsub.f32 1.0, %v1559
    %v1565 = vmul.f32 %v1564, %v1563
    %v1566 = vmul.f32 %v1559, %v1400
    %v1567 = vadd.f32 %v1565, %v1566
    %s1568 = scalar_lea.vmem [#allocation3], 168
    %v1569 = vld [vmem:[%s1568] sm:$0xff]
    %v1570 = vld [vmem:[%s1568 + $0x8] sm:$0xff]
    %v1571 = vld [vmem:[%s1568 + $0x10] sm:$0xff]
    %1572 = vmatprep.subr.mxu0 %v88
    %1573 = vmatpush1.msra.mxu0 %v87
    %1574 = vmatprep.subr.mxu0 %v85
    %1575 = vmatpush1.msra.mxu0 %v84
    %1576 = vmatprep.subr.mxu0 %v82
    %1577 = vmatpush1.msra.mxu0 %v81
    %1578 = vmatprep.subr.mxu0 %v79
    %1579 = vmatpush1.msra.mxu0 %v78
    %1580 = vmatprep.subr.mxu0 %v76
    %1581 = vmatpush1.msra.mxu0 %v75
    %1582 = vmatprep.subr.mxu0 %v73
    %1583 = vmatpush1.msra.mxu0 %v72
    %1584 = vmatprep.subr.mxu0 %v70
    %1585 = vmatpush1.msra.mxu0 %v69
    %1586 = vmatprep.subr.mxu0 %v67
    %1587 = vmatpush1.msra.mxu0 %v66
    %1588 = vmatprep.subr.mxu0 %v64
    %1589 = vmatpush1.msra.mxu0 %v63
    %1590 = vmatprep.subr.mxu0 %v61
    %1591 = vmatpush1.msra.mxu0 %v60
    %1592 = vmatprep.subr.mxu0 %v58
    %1593 = vmatpush1.msra.mxu0 %v57
    %1594 = vmatprep.subr.mxu0 %v55
    %1595 = vmatpush1.msra.mxu0 %v54
    %1596 = vmatprep.subr.mxu0 %v52
    %1597 = vmatpush1.msra.mxu0 %v51
    %1598 = vmatprep.subr.mxu0 %v49
    %1599 = vmatpush1.msra.mxu0 %v48
    %1600 = vmatprep.subr.mxu0 %v46
    %1601 = vmatpush1.msra.mxu0 %v45
    %1602 = vmatprep.subr.mxu0 %v43
    %1603 = vmatpush1.msra.mxu0 %v42
    %1604 = vmatprep.subr.mxu0 0.0
    %1605 = vmatpush2.msra.mxu0 0.0
    %1606 = vmatprep.subr.mxu0 0.0
    %1607 = vmatpush2.msra.mxu0 0.0
    %1608 = vmatprep.subr.mxu0 0.0
    %1609 = vmatpush2.msra.mxu0 0.0
    %1610 = vmatprep.subr.mxu0 0.0
    %1611 = vmatpush2.msra.mxu0 0.0
    %1612 = vmatprep.subr.mxu0 0.0
    %1613 = vmatpush2.msra.mxu0 0.0
    %1614 = vmatprep.subr.mxu0 0.0
    %1615 = vmatpush2.msra.mxu0 0.0
    %1616 = vmatprep.subr.mxu0 0.0
    %1617 = vmatpush2.msra.mxu0 0.0
    %1618 = vmatprep.subr.mxu0 0.0
    %1619 = vmatpush2.msra.mxu0 0.0
    %1620 = vmatprep.subr.mxu0 0.0
    %1621 = vmatpush2.msra.mxu0 0.0
    %1622 = vmatprep.subr.mxu0 0.0
    %1623 = vmatpush2.msra.mxu0 0.0
    %1624 = vmatprep.subr.mxu0 0.0
    %1625 = vmatpush2.msra.mxu0 0.0
    %1626 = vmatprep.subr.mxu0 0.0
    %1627 = vmatpush2.msra.mxu0 0.0
    %1628 = vmatprep.subr.mxu0 0.0
    %1629 = vmatpush2.msra.mxu0 0.0
    %1630 = vmatprep.subr.mxu0 0.0
    %1631 = vmatpush2.msra.mxu0 0.0
    %1632 = vmatprep.subr.mxu0 0.0
    %1633 = vmatpush2.msra.mxu0 0.0
    %1634 = vmatprep.subr.mxu0 0.0
    %1635 = vmatpush2.msra.mxu0 0.0
    %1636 = vmatprep.mubr.f32.mxu0 0.0
    %1637 = vmatmul.mubr.f32.gmra.mxu0 %v1567
    %v1638 = vpop.f32.mrf.mxu0
    %v1639 = vadd.f32 0.0, %v1638
    %v1640 = vpop.f32.mrf.mxu0
    %v1641 = vadd.f32 0.0, %v1640
    %1642 = vdwg.mxu0
    %1643 = vmatprep.subr.mxu0 0.0
    %1644 = vmatpush1.msra.mxu0 %v89
    %1645 = vmatprep.subr.mxu0 0.0
    %1646 = vmatpush1.msra.mxu0 %v86
    %1647 = vmatprep.subr.mxu0 0.0
    %1648 = vmatpush1.msra.mxu0 %v83
    %1649 = vmatprep.subr.mxu0 0.0
    %1650 = vmatpush1.msra.mxu0 %v80
    %1651 = vmatprep.subr.mxu0 0.0
    %1652 = vmatpush1.msra.mxu0 %v77
    %1653 = vmatprep.subr.mxu0 0.0
    %1654 = vmatpush1.msra.mxu0 %v74
    %1655 = vmatprep.subr.mxu0 0.0
    %1656 = vmatpush1.msra.mxu0 %v71
    %1657 = vmatprep.subr.mxu0 0.0
    %1658 = vmatpush1.msra.mxu0 %v68
    %1659 = vmatprep.subr.mxu0 0.0
    %1660 = vmatpush1.msra.mxu0 %v65
    %1661 = vmatprep.subr.mxu0 0.0
    %1662 = vmatpush1.msra.mxu0 %v62
    %1663 = vmatprep.subr.mxu0 0.0
    %1664 = vmatpush1.msra.mxu0 %v59
    %1665 = vmatprep.subr.mxu0 0.0
    %1666 = vmatpush1.msra.mxu0 %v56
    %1667 = vmatprep.subr.mxu0 0.0
    %1668 = vmatpush1.msra.mxu0 %v53
    %1669 = vmatprep.subr.mxu0 0.0
    %1670 = vmatpush1.msra.mxu0 %v50
    %1671 = vmatprep.subr.mxu0 0.0
    %1672 = vmatpush1.msra.mxu0 %v47
    %1673 = vmatprep.subr.mxu0 0.0
    %1674 = vmatpush1.msra.mxu0 %v44
    %1675 = vmatprep.subr.mxu0 0.0
    %1676 = vmatpush2.msra.mxu0 0.0
    %1677 = vmatprep.subr.mxu0 0.0
    %1678 = vmatpush2.msra.mxu0 0.0
    %1679 = vmatprep.subr.mxu0 0.0
    %1680 = vmatpush2.msra.mxu0 0.0
    %1681 = vmatprep.subr.mxu0 0.0
    %1682 = vmatpush2.msra.mxu0 0.0
    %1683 = vmatprep.subr.mxu0 0.0
    %1684 = vmatpush2.msra.mxu0 0.0
    %1685 = vmatprep.subr.mxu0 0.0
    %1686 = vmatpush2.msra.mxu0 0.0
    %1687 = vmatprep.subr.mxu0 0.0
    %1688 = vmatpush2.msra.mxu0 0.0
    %1689 = vmatprep.subr.mxu0 0.0
    %1690 = vmatpush2.msra.mxu0 0.0
    %1691 = vmatprep.subr.mxu0 0.0
    %1692 = vmatpush2.msra.mxu0 0.0
    %1693 = vmatprep.subr.mxu0 0.0
    %1694 = vmatpush2.msra.mxu0 0.0
    %1695 = vmatprep.subr.mxu0 0.0
    %1696 = vmatpush2.msra.mxu0 0.0
    %1697 = vmatprep.subr.mxu0 0.0
    %1698 = vmatpush2.msra.mxu0 0.0
    %1699 = vmatprep.subr.mxu0 0.0
    %1700 = vmatpush2.msra.mxu0 0.0
    %1701 = vmatprep.subr.mxu0 0.0
    %1702 = vmatpush2.msra.mxu0 0.0
    %1703 = vmatprep.subr.mxu0 0.0
    %1704 = vmatpush2.msra.mxu0 0.0
    %1705 = vmatprep.subr.mxu0 0.0
    %1706 = vmatpush2.msra.mxu0 0.0
    %1707 = vmatprep.mubr.f32.mxu0 0.0
    %1708 = vmatmul.mubr.f32.gmra.mxu0 %v1567
    %v1709 = vpop.f32.mrf.mxu0
    %v1710 = vadd.f32 0.0, %v1709
    %v1711 = vpop.f32.mrf.mxu0
    %1712 = vdwg.mxu0
    %v1713 = vadd.f32 %v1569, %v1639
    %v1714 = vxor.u32 %v1713, 2147483648
    %v1715 = vmul.f32 %v1714, 1.442695
    %v1716 = vpow.pop %v1715
    %v1717 = vadd.f32 %v1716, 1.0
    %v1718 = vrcp.pop %v1717
    %v1719 = vmul.f32 1.0, %v1718
    %v1720 = vadd.f32 %v1570, %v1641
    %v1721 = vxor.u32 %v1720, 2147483648
    %v1722 = vmul.f32 %v1721, 1.442695
    %v1723 = vpow.pop %v1722
    %v1724 = vadd.f32 %v1723, 1.0
    %v1725 = vrcp.pop %v1724
    %v1726 = vmul.f32 1.0, %v1725
    %v1727 = vadd.f32 %v1710, %v397
    %v1728 = vmul.f32 %v1719, %v1727
    %v1729 = vadd.f32 %v1571, %v1728
    %v1730 = vtanh.pop %v1729
    %v1731 = vsub.f32 1.0, %v1726
    %v1732 = vmul.f32 %v1731, %v1730
    %v1733 = vmul.f32 %v1726, %v1567
    %v1734 = vadd.f32 %v1732, %v1733
    %1735 = vst [vmem:[#allocation2] sm:$0xff] %v1734
    // Predicated region
    $region30: #{tpu_custom_call.1} parent=1 // pred_check
      %p1736 = pneg %p35
    $region31: #{tpu_custom_call.1} parent=1 // pred_check_branch
      %1738 = sbr.rel (%p1736) target = $region33
    $region32: #{tpu_custom_call.1} parent=1 // pred_region
      %1739 = vst [vmem:[#allocation7] sm:$0xff] %v1734
    $region33: #{tpu_custom_call.1} parent=1 // pred_fallthru
      _
    // Predicated region
    $region34: #{tpu_custom_call.1} parent=1 // pred_check
      _
    $region35: #{tpu_custom_call.1} parent=1 // pred_check_branch
      %1741 = sbr.rel (0) target = $region37
    $region36: #{tpu_custom_call.1} parent=1 // pred_region
      %s1743 = ssub.s32 128, 128
      %1744 = vsyncadd [#allocation6], %s1743
      %s1746 = sshll.u32 [#allocation7], 4
      %s1747 = int_to_ptr.vmem [resolvable:$true] %s1746
      %1749 = dma.vmem_to_hbm [thread:$0]  %s1747, 128, %s5, [#allocation6]
    $region37: #{tpu_custom_call.1} parent=1 // pred_fallthru
      _
    // Predicated region
    $region38: #{tpu_custom_call.1} parent=1 // pred_check
      _
    $region39: #{tpu_custom_call.1} parent=1 // pred_check_branch
      %1751 = sbr.rel (0) target = $region41
    $region40: #{tpu_custom_call.1} parent=1 // pred_region
      %1752 = dma.done [#allocation6], 128
    $region41: #{tpu_custom_call.1} parent=1 // pred_fallthru
      _
    %1753 = vsyncpa [#allocation5], 1
    %1754 = vsyncpa [#allocation6], 1

</llo_original>
